<compile_context>
chip_gen: v6e
topology: v6e:2x2x1
jax: 0.10.0
libtpu: 0.0.40
codegen_flags: <defaults>
</compile_context>

<pallas_src>
import math
import functools

import jax
import jax.numpy as jnp
from jax import lax
from jax.experimental import pallas as pl
from jax.experimental.pallas import tpu as pltpu

BLOCK_SIZE = 256   # PyTorch registers a (256, 256) tril buffer; only [:T, :T] is used
N_EMBD = 64


def head_kernel(x_ref, wk_ref, wq_ref, wv_ref, bk_ref, bq_ref, bv_ref, o_ref):
    # x_ref: (NB, T, C); weights: (C, H); biases: (1, H) f32; o_ref: (NB, T, H)
    nb, T, C = x_ref.shape
    H = wk_ref.shape[1]

    # One big flattened projection matmul per weight: (NB*T, C) @ (C, H).
    xf = x_ref[...].reshape(nb * T, C)

    k = (jnp.dot(xf, wk_ref[...], preferred_element_type=jnp.float32)
         + bk_ref[...]).reshape(nb, T, H)
    # 1/sqrt(head_size) is pre-folded into wq/bq by the wrapper.
    q = (jnp.dot(xf, wq_ref[...], preferred_element_type=jnp.float32)
         + bq_ref[...]).reshape(nb, T, H)
    v = (jnp.dot(xf, wv_ref[...], preferred_element_type=jnp.float32)
         + bv_ref[...]).reshape(nb, T, H)

    # Batched scores q @ k^T without materializing k.T:
    # contract last dims, batch over dim 0.  -> (NB, T, T)
    scores = lax.dot_general(
        q, k,
        dimension_numbers=(((2,), (2,)), ((0,), (0,))),
        preferred_element_type=jnp.float32)

    # Causal mask == tril[:T, :T] (ones on/below diagonal), built once per step.
    row = lax.broadcasted_iota(jnp.int32, (T, T), 0)
    col = lax.broadcasted_iota(jnp.int32, (T, T), 1)
    scores = jnp.where((col <= row)[None, :, :], scores, -jnp.inf)

    # Numerically stable softmax; normalization is deferred to after the PV
    # matmul (T*H elements instead of T*T) and uses the EUP reciprocal.
    m = jnp.max(scores, axis=-1, keepdims=True)
    p = jnp.exp(scores - m)
    denom = jnp.sum(p, axis=-1, keepdims=True)            # (NB, T, 1)

    out = lax.dot_general(                                 # (NB, T, H)
        p, v,
        dimension_numbers=(((2,), (1,)), ((0,), (0,))),
        preferred_element_type=jnp.float32)
    out = out * pl.reciprocal(denom)                       # exact; keeps 1e-4 accuracy

    o_ref[...] = out.astype(o_ref.dtype)


def _pick_nb(B):
    """Largest batch-tile that still leaves >= 2 grid steps (keeps both v7x
    TensorCores busy) while amortizing per-grid-step overhead."""
    if B <= 1:
        return max(B, 1)
    return max(d for d in range(1, B // 2 + 1) if B % d == 0)


def head_forward(x, wk, bk, wq, bq, wv, bv, *, nb=None, use_bf16=False):
    """x: (B, T, C) float32; w*: (C, H); b*: (H,). Returns (B, T, H) float32."""
    B, T, C = x.shape
    H = wk.shape[1]
    assert T <= BLOCK_SIZE

    # Fold the 1/sqrt(head_size) attention scale into the query projection.
    scale = 1.0 / math.sqrt(H)
    wq_s = wq * scale
    bq_s = bq * scale

    if nb is None:
        nb = _pick_nb(B)
    assert B % nb == 0
    grid = (B // nb,)

    if use_bf16:
        # bf16 matmul operands (v6e/v7x MXU native); accumulation + softmax f32.
        x_in = x.astype(jnp.bfloat16)
        wk_in = wk.astype(jnp.bfloat16)
        wq_in = wq_s.astype(jnp.bfloat16)
        wv_in = wv.astype(jnp.bfloat16)
    else:
        x_in, wk_in, wq_in, wv_in = x, wk, wq_s, wv

    bk2 = bk.reshape(1, H).astype(jnp.float32)
    bq2 = bq_s.reshape(1, H).astype(jnp.float32)
    bv2 = bv.reshape(1, H).astype(jnp.float32)

    return pl.pallas_call(
        head_kernel,
        out_shape=jax.ShapeDtypeStruct((B, T, H), x.dtype),
        grid_spec=pltpu.PrefetchScalarGridSpec(
            num_scalar_prefetch=0,
            grid=grid,
            in_specs=[
                pl.BlockSpec((nb, T, C), lambda b: (b, 0, 0)),   # x, NB batches/step
                pl.BlockSpec((C, H), lambda b: (0, 0)),          # Wk (resident)
                pl.BlockSpec((C, H), lambda b: (0, 0)),          # Wq (pre-scaled)
                pl.BlockSpec((C, H), lambda b: (0, 0)),          # Wv
                pl.BlockSpec((1, H), lambda b: (0, 0)),          # bk
                pl.BlockSpec((1, H), lambda b: (0, 0)),          # bq (pre-scaled)
                pl.BlockSpec((1, H), lambda b: (0, 0)),          # bv
            ],
            out_specs=pl.BlockSpec((nb, T, H), lambda b: (b, 0, 0)),
        ),
        compiler_params=pltpu.CompilerParams(
            dimension_semantics=("parallel",),
        ),
    )(x_in, wk_in, wq_in, wv_in, bk2, bq2, bv2)


def init_params(key, n_embd, head_size):
    """Deterministic init mirroring nn.Linear(n_embd, head_size) shapes.
    PyTorch weight is (head_size, n_embd); we keep the transposed (n_embd, head_size)."""
    ks = jax.random.split(key, 6)
    bound = 1.0 / math.sqrt(n_embd)
    wk = jax.random.uniform(ks[0], (n_embd, head_size), jnp.float32, -bound, bound)
    bk = jax.random.uniform(ks[1], (head_size,), jnp.float32, -bound, bound)
    wq = jax.random.uniform(ks[2], (n_embd, head_size), jnp.float32, -bound, bound)
    bq = jax.random.uniform(ks[3], (head_size,), jnp.float32, -bound, bound)
    wv = jax.random.uniform(ks[4], (n_embd, head_size), jnp.float32, -bound, bound)
    bv = jax.random.uniform(ks[5], (head_size,), jnp.float32, -bound, bound)
    return wk, bk, wq, bq, wv, bv


def reference_forward(x, wk, bk, wq, bq, wv, bv):
    """Pure-JAX reference matching the PyTorch forward exactly."""
    k = x @ wk + bk
    q = x @ wq + bq
    v = x @ wv + bv
    scores = jnp.einsum("btd,bsd->bts", q, k) / (k.shape[-1] ** 0.5)
    T = scores.shape[-1]
    tril = jnp.tril(jnp.ones((T, T)))
    scores = jnp.where(tril == 0, -jnp.inf, scores)
    p = jax.nn.softmax(scores, axis=-1)
    return p @ v


if __name__ == "__main__":
    key = jax.random.PRNGKey(0)
    k_x, k_p = jax.random.split(key)

    B, T, C, HEAD = 8, 32, N_EMBD, 16
    x = jax.random.normal(k_x, (B, T, C), dtype=jnp.float32)
    wk, bk, wq, bq, wv, bv = init_params(k_p, C, HEAD)

    ref = reference_forward(x, wk, bk, wq, bq, wv, bv)

    # f32 path (exact semantics of the PyTorch module)
    out = head_forward(x, wk, bk, wq, bq, wv, bv)
    out = jax.block_until_ready(out)
    assert out.shape == (B, T, HEAD)
    assert jnp.allclose(out, ref, atol=1e-4, rtol=1e-4), "f32 kernel mismatch vs reference"

    # bf16-operand path (v6e/v7x MXU-friendly); f32 accumulation + softmax.
    out_bf16 = head_forward(x, wk, bk, wq, bq, wv, bv, use_bf16=True)
    out_bf16 = jax.block_until_ready(out_bf16)
    assert out_bf16.shape == (B, T, HEAD)
    assert bool(jnp.all(jnp.isfinite(out_bf16)))
    assert float(jnp.max(jnp.abs(out_bf16 - ref))) < 1e-1, "bf16 kernel diverged"

    print("KERNEL_OK")
</pallas_src>

<mosaic_0001>
module attributes {stable_mosaic.version = 11 : i64} {
  func.func @head_kernel(%arg0: i32, %arg1: memref<4x32x64xf32, #tpu.memory_space<vmem>>, %arg2: memref<64x16xf32, #tpu.memory_space<vmem>>, %arg3: memref<64x16xf32, #tpu.memory_space<vmem>>, %arg4: memref<64x16xf32, #tpu.memory_space<vmem>>, %arg5: memref<1x16xf32, #tpu.memory_space<vmem>>, %arg6: memref<1x16xf32, #tpu.memory_space<vmem>>, %arg7: memref<1x16xf32, #tpu.memory_space<vmem>>, %arg8: memref<4x32x16xf32, #tpu.memory_space<vmem>>) attributes {dimension_semantics = [#tpu.dimension_semantics<parallel>], iteration_bounds = array<i64: 2>, scalar_prefetch = 0 : i64, scratch_operands = 0 : i64, tpu.core_type = #tpu.core_type<tc>, window_params = [{transform_indices = @transform_0, window_bounds = array<i64: 4, 32, 64>}, {pipeline_mode = #tpu.pipeline_mode<synchronous>, transform_indices = @transform_1, window_bounds = array<i64: 64, 16>}, {pipeline_mode = #tpu.pipeline_mode<synchronous>, transform_indices = @transform_2, window_bounds = array<i64: 64, 16>}, {pipeline_mode = #tpu.pipeline_mode<synchronous>, transform_indices = @transform_3, window_bounds = array<i64: 64, 16>}, {pipeline_mode = #tpu.pipeline_mode<synchronous>, transform_indices = @transform_4, window_bounds = array<i64: 1, 16>}, {pipeline_mode = #tpu.pipeline_mode<synchronous>, transform_indices = @transform_5, window_bounds = array<i64: 1, 16>}, {pipeline_mode = #tpu.pipeline_mode<synchronous>, transform_indices = @transform_6, window_bounds = array<i64: 1, 16>}, {transform_indices = @transform_7, window_bounds = array<i64: 4, 32, 16>}]} {
    %c0 = arith.constant 0 : index
    %c0_0 = arith.constant 0 : index
    %c0_1 = arith.constant 0 : index
    %0 = vector.load %arg1[%c0, %c0_0, %c0_1] : memref<4x32x64xf32, #tpu.memory_space<vmem>>, vector<4x32x64xf32>
    %1 = vector.shape_cast %0 : vector<4x32x64xf32> to vector<128x64xf32>
    %c0_2 = arith.constant 0 : index
    %c0_3 = arith.constant 0 : index
    %2 = vector.load %arg2[%c0_2, %c0_3] : memref<64x16xf32, #tpu.memory_space<vmem>>, vector<64x16xf32>
    %cst = arith.constant dense<0.000000e+00> : vector<128x16xf32>
    %3 = tpu.matmul %1, %2, %cst {dimension_numbers = #tpu.dot_dimension_numbers<[1], [0], [0], [1], [0, 0, 1, 1], [], []>} : vector<128x64xf32>, vector<64x16xf32>, vector<128x16xf32> -> vector<128x16xf32>
    %c0_4 = arith.constant 0 : index
    %c0_5 = arith.constant 0 : index
    %4 = vector.load %arg5[%c0_4, %c0_5] : memref<1x16xf32, #tpu.memory_space<vmem>>, vector<1x16xf32>
    %5 = vector.broadcast %4 : vector<1x16xf32> to vector<128x16xf32>
    %6 = arith.addf %3, %5 : vector<128x16xf32>
    %7 = vector.shape_cast %6 : vector<128x16xf32> to vector<4x32x16xf32>
    %c0_6 = arith.constant 0 : index
    %c0_7 = arith.constant 0 : index
    %8 = vector.load %arg3[%c0_6, %c0_7] : memref<64x16xf32, #tpu.memory_space<vmem>>, vector<64x16xf32>
    %cst_8 = arith.constant dense<0.000000e+00> : vector<128x16xf32>
    %9 = tpu.matmul %1, %8, %cst_8 {dimension_numbers = #tpu.dot_dimension_numbers<[1], [0], [0], [1], [0, 0, 1, 1], [], []>} : vector<128x64xf32>, vector<64x16xf32>, vector<128x16xf32> -> vector<128x16xf32>
    %c0_9 = arith.constant 0 : index
    %c0_10 = arith.constant 0 : index
    %10 = vector.load %arg6[%c0_9, %c0_10] : memref<1x16xf32, #tpu.memory_space<vmem>>, vector<1x16xf32>
    %11 = vector.broadcast %10 : vector<1x16xf32> to vector<128x16xf32>
    %12 = arith.addf %9, %11 : vector<128x16xf32>
    %13 = vector.shape_cast %12 : vector<128x16xf32> to vector<4x32x16xf32>
    %c0_11 = arith.constant 0 : index
    %c0_12 = arith.constant 0 : index
    %14 = vector.load %arg4[%c0_11, %c0_12] : memref<64x16xf32, #tpu.memory_space<vmem>>, vector<64x16xf32>
    %cst_13 = arith.constant dense<0.000000e+00> : vector<128x16xf32>
    %15 = tpu.matmul %1, %14, %cst_13 {dimension_numbers = #tpu.dot_dimension_numbers<[1], [0], [0], [1], [0, 0, 1, 1], [], []>} : vector<128x64xf32>, vector<64x16xf32>, vector<128x16xf32> -> vector<128x16xf32>
    %c0_14 = arith.constant 0 : index
    %c0_15 = arith.constant 0 : index
    %16 = vector.load %arg7[%c0_14, %c0_15] : memref<1x16xf32, #tpu.memory_space<vmem>>, vector<1x16xf32>
    %17 = vector.broadcast %16 : vector<1x16xf32> to vector<128x16xf32>
    %18 = arith.addf %15, %17 : vector<128x16xf32>
    %19 = vector.shape_cast %18 : vector<128x16xf32> to vector<4x32x16xf32>
    %cst_16 = arith.constant dense<0.000000e+00> : vector<4x32x32xf32>
    %20 = tpu.matmul %13, %7, %cst_16 {dimension_numbers = #tpu.dot_dimension_numbers<[2], [2], [1], [1], [0, 0, 0, 1, 1, 1], [0], [0]>} : vector<4x32x16xf32>, vector<4x32x16xf32>, vector<4x32x32xf32> -> vector<4x32x32xf32>
    %21 = tpu.iota {dimensions = array<i32: 0>} : vector<32x32xi32>
    %22 = tpu.iota {dimensions = array<i32: 1>} : vector<32x32xi32>
    %23 = arith.cmpi sle, %22, %21 : vector<32x32xi32>
    %24 = vector.shape_cast %23 : vector<32x32xi1> to vector<1x32x32xi1>
    %cst_17 = arith.constant 0xFF800000 : f32
    %25 = vector.shape_cast %24 : vector<1x32x32xi1> to vector<1x32x32xi1>
    %26 = vector.broadcast %25 : vector<1x32x32xi1> to vector<4x32x32xi1>
    %27 = vector.broadcast %cst_17 : f32 to vector<4x32x32xf32>
    %28 = arith.select %26, %20, %27 : vector<4x32x32xi1>, vector<4x32x32xf32>
    %cst_18 = arith.constant dense<0xFF800000> : vector<4x32xf32>
    %29 = vector.multi_reduction <maximumf>, %28, %cst_18 [2] : vector<4x32x32xf32> to vector<4x32xf32>
    %30 = vector.shape_cast %29 : vector<4x32xf32> to vector<4x32x1xf32>
    %31 = vector.broadcast %30 : vector<4x32x1xf32> to vector<4x32x32xf32>
    %32 = arith.subf %28, %31 : vector<4x32x32xf32>
    %33 = math.exp %32 : vector<4x32x32xf32>
    %cst_19 = arith.constant dense<0.000000e+00> : vector<4x32xf32>
    %34 = vector.multi_reduction <add>, %33, %cst_19 [2] : vector<4x32x32xf32> to vector<4x32xf32>
    %35 = vector.shape_cast %34 : vector<4x32xf32> to vector<4x32x1xf32>
    %cst_20 = arith.constant dense<0.000000e+00> : vector<4x32x16xf32>
    %36 = tpu.matmul %33, %19, %cst_20 {dimension_numbers = #tpu.dot_dimension_numbers<[2], [1], [1], [2], [0, 0, 0, 1, 1, 2], [0], [0]>} : vector<4x32x32xf32>, vector<4x32x16xf32>, vector<4x32x16xf32> -> vector<4x32x16xf32>
    %37 = tpu.reciprocal %35 : vector<4x32x1xf32> -> vector<4x32x1xf32>
    %38 = vector.broadcast %37 : vector<4x32x1xf32> to vector<4x32x16xf32>
    %39 = arith.mulf %36, %38 : vector<4x32x16xf32>
    %c0_21 = arith.constant 0 : index
    %c0_22 = arith.constant 0 : index
    %c0_23 = arith.constant 0 : index
    %40 = vector.load %arg8[%c0_21, %c0_22, %c0_23] : memref<4x32x16xf32, #tpu.memory_space<vmem>>, vector<4x32x16xf32>
    tpu.vector_store %arg8[%c0_21, %c0_22, %c0_23], %39 {strides = array<i32>} : memref<4x32x16xf32, #tpu.memory_space<vmem>>, vector<4x32x16xf32>,
    return
  }
  func.func @transform_0(%arg0: i32) -> (i32, i32, i32) {
    %c0_i32 = arith.constant 0 : i32
    %c0_i32_0 = arith.constant 0 : i32
    %c0_i32_1 = arith.constant 0 : i32
    return %arg0, %c0_i32, %c0_i32_0 : i32, i32, i32
  }
  func.func @transform_1(%arg0: i32) -> (i32, i32) {
    %c0_i32 = arith.constant 0 : i32
    %c0_i32_0 = arith.constant 0 : i32
    %c0_i32_1 = arith.constant 0 : i32
    return %c0_i32, %c0_i32_0 : i32, i32
  }
  func.func @transform_2(%arg0: i32) -> (i32, i32) {
    %c0_i32 = arith.constant 0 : i32
    %c0_i32_0 = arith.constant 0 : i32
    %c0_i32_1 = arith.constant 0 : i32
    return %c0_i32, %c0_i32_0 : i32, i32
  }
  func.func @transform_3(%arg0: i32) -> (i32, i32) {
    %c0_i32 = arith.constant 0 : i32
    %c0_i32_0 = arith.constant 0 : i32
    %c0_i32_1 = arith.constant 0 : i32
    return %c0_i32, %c0_i32_0 : i32, i32
  }
  func.func @transform_4(%arg0: i32) -> (i32, i32) {
    %c0_i32 = arith.constant 0 : i32
    %c0_i32_0 = arith.constant 0 : i32
    %c0_i32_1 = arith.constant 0 : i32
    return %c0_i32, %c0_i32_0 : i32, i32
  }
  func.func @transform_5(%arg0: i32) -> (i32, i32) {
    %c0_i32 = arith.constant 0 : i32
    %c0_i32_0 = arith.constant 0 : i32
    %c0_i32_1 = arith.constant 0 : i32
    return %c0_i32, %c0_i32_0 : i32, i32
  }
  func.func @transform_6(%arg0: i32) -> (i32, i32) {
    %c0_i32 = arith.constant 0 : i32
    %c0_i32_0 = arith.constant 0 : i32
    %c0_i32_1 = arith.constant 0 : i32
    return %c0_i32, %c0_i32_0 : i32, i32
  }
  func.func @transform_7(%arg0: i32) -> (i32, i32, i32) {
    %c0_i32 = arith.constant 0 : i32
    %c0_i32_0 = arith.constant 0 : i32
    %c0_i32_1 = arith.constant 0 : i32
    return %arg0, %c0_i32, %c0_i32_0 : i32, i32, i32
  }
}

</mosaic_0001>

<llo_original>
// kernel: tpu_custom_call.1
$region0: #{tpu_custom_call.1}
  #allocation0 [shape = 'u32[]', space=smem, size = 0x4, offset = 0x4, fixed_abs, tag = 'smem constant byte address 0x4 - core index']
  #allocation1 [shape = 'u32[144,128]{1,0:T(1,128)}', space=vmem, size = 0x12000, scoped, tag = 'internal scratch']
  %s0 = inlined_call_operand.hbm [shape: f32[8,32,64], index: 0, kind: input, shape index: {}]
  %s1 = inlined_call_operand.vmem [shape: f32[64,16], index: 1, kind: input, shape index: {}]
  %s2 = inlined_call_operand.vmem [shape: f32[64,16], index: 2, kind: input, shape index: {}]
  %s3 = inlined_call_operand.vmem [shape: f32[64,16], index: 3, kind: input, shape index: {}]
  %s4 = inlined_call_operand.vmem [shape: f32[1,16], index: 4, kind: input, shape index: {}]
  %s5 = inlined_call_operand.vmem [shape: f32[1,16], index: 5, kind: input, shape index: {}]
  %s6 = inlined_call_operand.vmem [shape: f32[1,16], index: 6, kind: input, shape index: {}]
  %s7 = inlined_call_operand.vmem [shape: f32[8,32,16], index: 7, kind: output, shape index: {}]
  %s8 = sld [smem:[#allocation0]]
  $region65: #{tpu_custom_call.1} parent=0
    _
  %s10 = ssub.s32 1, %s8
  %s11 = scalar_select 0, %s10, %s8
  $region1: #{tpu_custom_call.1} parent=0
    #allocation2 [shape = 'u8[131072]{0}', space=vmem, size = 0x20000, scoped, tag = 'input window, operand 0']
    #allocation3 [shape = 's32[2]{0}', space=sflag, size = 0x8, scoped, tag = 'scoped memory for tpu_custom_call.1']
    %12 = vsyncpa [#allocation3], 0
    %s13 = scalar_lea.sflag [#allocation3], 1
    %14 = vsyncpa %s13, 0
    loop: start=0, step=1, limit=4
    $region2: #{tpu_custom_call.1} parent=1 // loop_pre_header
      _
    $region3: #{tpu_custom_call.1} parent=1 // loop_header
      %s16 = sphi 0, %s20
      %p17 = scmp.ge.s32.totalorder %s16, 4
      %s26 = sphi 0, %s28
      %s29 = sphi 0, %s26
      %s30 = sphi 0, %s29
      %s46 = sphi 0, %s30
      %s50 = sphi 0, %s50
      %s52 = sphi 0, %s50
      %s53 = sphi 0, %s52
      %s67 = sphi 0, %s53
      %s71 = sphi 0, %s71
      %s73 = sphi 0, %s71
      %s74 = sphi 0, %s73
      %s88 = sphi 0, %s74
      %s92 = sphi 0, %s92
      %s94 = sphi 0, %s92
      %s95 = sphi 0, %s94
      %s109 = sphi 0, %s95
      %s113 = sphi 0, %s113
      %s115 = sphi 0, %s113
      %s116 = sphi 0, %s115
      %s130 = sphi 0, %s116
      %s134 = sphi 0, %s134
      %s136 = sphi 0, %s134
      %s137 = sphi 0, %s136
      %s151 = sphi 0, %s137
      %s155 = sphi 0, %s155
      %s157 = sphi 0, %s155
      %s158 = sphi 0, %s157
      %s172 = sphi 0, %s158
      %s178 = sphi 0, %s180
      %s181 = sphi 0, %s178
      %s182 = sphi 0, %s181
      %s198 = sphi 0, %s182
    $region4: #{tpu_custom_call.1} parent=1 // loop_header_branch
      %19 = sbr.rel (%p17) target = $region8
    $region5: #{tpu_custom_call.1} parent=1 // loop_body
      %s21 = ssub.s32 %s16, 1
      %s22 = ssub.s32 %s16, 2
      %s23 = sadd.s32 %s16, 1
      %s24 = ssub.s32 %s16, %s23
      %p25 = scmp.eq.s32.totalorder %s24, 0
      %s27 = sadd.s32 %s26, 1
      %s28 = scalar_select %p25, %s26, %s27
      %p31 = pneg %p25
      %p32 = scmp.eq.s32.totalorder %s16, 1
      %p33 = por %p31, %p32
      %p34 = scmp.ne.s32.totalorder %s26, %s29
      %p35 = scmp.eq.s32.totalorder %s16, 0
      %p36 = por %p34, %p35
      %p37 = scmp.ne.s32.totalorder %s26, %s29
      %p38 = scmp.eq.s32.totalorder %s21, 1
      %p39 = por %p37, %p38
      %p40 = scmp.ne.s32.totalorder %s29, %s30
      %p41 = scmp.eq.s32.totalorder %s21, 0
      %p42 = por %p40, %p41
      %p43 = scmp.ne.s32.totalorder %s29, %s30
      %p44 = scmp.eq.s32.totalorder %s22, 1
      %p45 = por %p43, %p44
      %p47 = scmp.ne.s32.totalorder %s30, %s46
      %p48 = scmp.eq.s32.totalorder %s22, 0
      %p49 = por %p47, %p48
      %s51 = sadd.s32 %s50, 1
      %p54 = scmp.eq.s32.totalorder %s16, 1
      %p55 = scmp.ne.s32.totalorder %s50, %s52
      %p56 = scmp.eq.s32.totalorder %s16, 0
      %p57 = por %p55, %p56
      %p58 = scmp.ne.s32.totalorder %s50, %s52
      %p59 = scmp.eq.s32.totalorder %s21, 1
      %p60 = por %p58, %p59
      %p61 = scmp.ne.s32.totalorder %s52, %s53
      %p62 = scmp.eq.s32.totalorder %s21, 0
      %p63 = por %p61, %p62
      %p64 = scmp.ne.s32.totalorder %s52, %s53
      %p65 = scmp.eq.s32.totalorder %s22, 1
      %p66 = por %p64, %p65
      %p68 = scmp.ne.s32.totalorder %s53, %s67
      %p69 = scmp.eq.s32.totalorder %s22, 0
      %p70 = por %p68, %p69
      %s72 = sadd.s32 %s71, 1
      %p75 = scmp.eq.s32.totalorder %s16, 1
      %p76 = scmp.ne.s32.totalorder %s71, %s73
      %p77 = scmp.eq.s32.totalorder %s16, 0
      %p78 = por %p76, %p77
      %p79 = scmp.ne.s32.totalorder %s71, %s73
      %p80 = scmp.eq.s32.totalorder %s21, 1
      %p81 = por %p79, %p80
      %p82 = scmp.ne.s32.totalorder %s73, %s74
      %p83 = scmp.eq.s32.totalorder %s21, 0
      %p84 = por %p82, %p83
      %p85 = scmp.ne.s32.totalorder %s73, %s74
      %p86 = scmp.eq.s32.totalorder %s22, 1
      %p87 = por %p85, %p86
      %p89 = scmp.ne.s32.totalorder %s74, %s88
      %p90 = scmp.eq.s32.totalorder %s22, 0
      %p91 = por %p89, %p90
      %s93 = sadd.s32 %s92, 1
      %p96 = scmp.eq.s32.totalorder %s16, 1
      %p97 = scmp.ne.s32.totalorder %s92, %s94
      %p98 = scmp.eq.s32.totalorder %s16, 0
      %p99 = por %p97, %p98
      %p100 = scmp.ne.s32.totalorder %s92, %s94
      %p101 = scmp.eq.s32.totalorder %s21, 1
      %p102 = por %p100, %p101
      %p103 = scmp.ne.s32.totalorder %s94, %s95
      %p104 = scmp.eq.s32.totalorder %s21, 0
      %p105 = por %p103, %p104
      %p106 = scmp.ne.s32.totalorder %s94, %s95
      %p107 = scmp.eq.s32.totalorder %s22, 1
      %p108 = por %p106, %p107
      %p110 = scmp.ne.s32.totalorder %s95, %s109
      %p111 = scmp.eq.s32.totalorder %s22, 0
      %p112 = por %p110, %p111
      %s114 = sadd.s32 %s113, 1
      %p117 = scmp.eq.s32.totalorder %s16, 1
      %p118 = scmp.ne.s32.totalorder %s113, %s115
      %p119 = scmp.eq.s32.totalorder %s16, 0
      %p120 = por %p118, %p119
      %p121 = scmp.ne.s32.totalorder %s113, %s115
      %p122 = scmp.eq.s32.totalorder %s21, 1
      %p123 = por %p121, %p122
      %p124 = scmp.ne.s32.totalorder %s115, %s116
      %p125 = scmp.eq.s32.totalorder %s21, 0
      %p126 = por %p124, %p125
      %p127 = scmp.ne.s32.totalorder %s115, %s116
      %p128 = scmp.eq.s32.totalorder %s22, 1
      %p129 = por %p127, %p128
      %p131 = scmp.ne.s32.totalorder %s116, %s130
      %p132 = scmp.eq.s32.totalorder %s22, 0
      %p133 = por %p131, %p132
      %s135 = sadd.s32 %s134, 1
      %p138 = scmp.eq.s32.totalorder %s16, 1
      %p139 = scmp.ne.s32.totalorder %s134, %s136
      %p140 = scmp.eq.s32.totalorder %s16, 0
      %p141 = por %p139, %p140
      %p142 = scmp.ne.s32.totalorder %s134, %s136
      %p143 = scmp.eq.s32.totalorder %s21, 1
      %p144 = por %p142, %p143
      %p145 = scmp.ne.s32.totalorder %s136, %s137
      %p146 = scmp.eq.s32.totalorder %s21, 0
      %p147 = por %p145, %p146
      %p148 = scmp.ne.s32.totalorder %s136, %s137
      %p149 = scmp.eq.s32.totalorder %s22, 1
      %p150 = por %p148, %p149
      %p152 = scmp.ne.s32.totalorder %s137, %s151
      %p153 = scmp.eq.s32.totalorder %s22, 0
      %p154 = por %p152, %p153
      %s156 = sadd.s32 %s155, 1
      %p159 = scmp.eq.s32.totalorder %s16, 1
      %p160 = scmp.ne.s32.totalorder %s155, %s157
      %p161 = scmp.eq.s32.totalorder %s16, 0
      %p162 = por %p160, %p161
      %p163 = scmp.ne.s32.totalorder %s155, %s157
      %p164 = scmp.eq.s32.totalorder %s21, 1
      %p165 = por %p163, %p164
      %p166 = scmp.ne.s32.totalorder %s157, %s158
      %p167 = scmp.eq.s32.totalorder %s21, 0
      %p168 = por %p166, %p167
      %p169 = scmp.ne.s32.totalorder %s157, %s158
      %p170 = scmp.eq.s32.totalorder %s22, 1
      %p171 = por %p169, %p170
      %p173 = scmp.ne.s32.totalorder %s158, %s172
      %p174 = scmp.eq.s32.totalorder %s22, 0
      %p175 = por %p173, %p174
      %s176 = ssub.s32 %s16, %s23
      %p177 = scmp.eq.s32.totalorder %s176, 0
      %s179 = sadd.s32 %s178, 1
      %s180 = scalar_select %p177, %s178, %s179
      %p183 = pneg %p177
      %p184 = scmp.eq.s32.totalorder %s16, 1
      %p185 = por %p183, %p184
      %p186 = scmp.ne.s32.totalorder %s178, %s181
      %p187 = scmp.eq.s32.totalorder %s16, 0
      %p188 = por %p186, %p187
      %p189 = scmp.ne.s32.totalorder %s178, %s181
      %p190 = scmp.eq.s32.totalorder %s21, 1
      %p191 = por %p189, %p190
      %p192 = scmp.ne.s32.totalorder %s181, %s182
      %p193 = scmp.eq.s32.totalorder %s21, 0
      %p194 = por %p192, %p193
      %p195 = scmp.ne.s32.totalorder %s181, %s182
      %p196 = scmp.eq.s32.totalorder %s22, 1
      %p197 = por %p195, %p196
      %p199 = scmp.ne.s32.totalorder %s182, %s198
      %p200 = scmp.eq.s32.totalorder %s22, 0
      %p201 = por %p199, %p200
      %p202 = scmp.le.s32.totalorder 1, %s16
      %p203 = scmp.lt.s32.totalorder %s16, 3
      %p204 = pnand %p202, %p203
      %p205 = pneg %p204
      // Predicated region
      $region9: #{tpu_custom_call.1} parent=5 // pred_check
        _
      $region10: #{tpu_custom_call.1} parent=5 // pred_check_branch
        %207 = sbr.rel (%p204) target = $region12
      $region11: #{tpu_custom_call.1} parent=5 // pred_region
        %s208 = ssub.s32 %s16, 1
        // Predicated region
        $region13: #{tpu_custom_call.1} parent=11 // pred_check
          %p209 = pneg %p63
        $region14: #{tpu_custom_call.1} parent=11 // pred_check_branch
          %211 = sbr.rel (%p209) target = $region16
        $region15: #{tpu_custom_call.1} parent=11 // pred_region
          _
        $region16: #{tpu_custom_call.1} parent=11 // pred_fallthru
          _
        // Predicated region
        $region17: #{tpu_custom_call.1} parent=11 // pred_check
          %p212 = pneg %p84
        $region18: #{tpu_custom_call.1} parent=11 // pred_check_branch
          %214 = sbr.rel (%p212) target = $region20
        $region19: #{tpu_custom_call.1} parent=11 // pred_region
          _
        $region20: #{tpu_custom_call.1} parent=11 // pred_fallthru
          _
        // Predicated region
        $region21: #{tpu_custom_call.1} parent=11 // pred_check
          %p215 = pneg %p105
        $region22: #{tpu_custom_call.1} parent=11 // pred_check_branch
          %217 = sbr.rel (%p215) target = $region24
        $region23: #{tpu_custom_call.1} parent=11 // pred_region
          _
        $region24: #{tpu_custom_call.1} parent=11 // pred_fallthru
          _
        // Predicated region
        $region25: #{tpu_custom_call.1} parent=11 // pred_check
          %p218 = pneg %p126
        $region26: #{tpu_custom_call.1} parent=11 // pred_check_branch
          %220 = sbr.rel (%p218) target = $region28
        $region27: #{tpu_custom_call.1} parent=11 // pred_region
          _
        $region28: #{tpu_custom_call.1} parent=11 // pred_fallthru
          _
        // Predicated region
        $region29: #{tpu_custom_call.1} parent=11 // pred_check
          %p221 = pneg %p147
        $region30: #{tpu_custom_call.1} parent=11 // pred_check_branch
          %223 = sbr.rel (%p221) target = $region32
        $region31: #{tpu_custom_call.1} parent=11 // pred_region
          _
        $region32: #{tpu_custom_call.1} parent=11 // pred_fallthru
          _
        // Predicated region
        $region33: #{tpu_custom_call.1} parent=11 // pred_check
          %p224 = pneg %p168
        $region34: #{tpu_custom_call.1} parent=11 // pred_check_branch
          %226 = sbr.rel (%p224) target = $region36
        $region35: #{tpu_custom_call.1} parent=11 // pred_region
          _
        $region36: #{tpu_custom_call.1} parent=11 // pred_fallthru
          _
      $region12: #{tpu_custom_call.1} parent=5 // pred_fallthru
        _
      %p227 = scmp.lt.s32.totalorder %s16, 2
      // Predicated region
      $region37: #{tpu_custom_call.1} parent=5 // pred_check
        %p228 = pneg %p227
      $region38: #{tpu_custom_call.1} parent=5 // pred_check_branch
        %230 = sbr.rel (%p228) target = $region40
      $region39: #{tpu_custom_call.1} parent=5 // pred_region
        // Predicated region
        $region41: #{tpu_custom_call.1} parent=39 // pred_check
          %p231 = pneg %p36
        $region42: #{tpu_custom_call.1} parent=39 // pred_check_branch
          %233 = sbr.rel (%p231) target = $region44
        $region43: #{tpu_custom_call.1} parent=39 // pred_region
          %s234 = sand.u32 %s26, 1
          %s235 = scalar_lea.sflag [#allocation3], %s234
          %s236 = sand.u32 %s26, 1
          %s237 = smul.addr %s236, 128
          %s238 = scalar_lea.vmem [#allocation2], %s237
          %s239 = smul.u32 4, %s16
          %s241 = ssub.s32 2048, 2048
          %242 = vsyncadd %s235, %s241
          %s243 = smul.addr %s239, 4
          %s244 = smul.addr %s243, 128
          %s245 = scalar_lea.hbm %s0, %s244
          %s246 = sshll.u32 %s238, 4
          %s247 = int_to_ptr.vmem [resolvable:$true] %s246
          %252 = dma.hbm_to_vmem [thread:$0]  %s245, 2048, %s247, %s235, 128, 128, 8
        $region44: #{tpu_custom_call.1} parent=39 // pred_fallthru
          _
      $region40: #{tpu_custom_call.1} parent=5 // pred_fallthru
        _
      %p253 = scmp.le.s32.totalorder 1, %s16
      %p254 = scmp.lt.s32.totalorder %s16, 3
      %p255 = pnand %p253, %p254
      %p256 = pneg %p255
      // Predicated region
      $region45: #{tpu_custom_call.1} parent=5 // pred_check
        _
      $region46: #{tpu_custom_call.1} parent=5 // pred_check_branch
        %258 = sbr.rel (%p255) target = $region48
      $region47: #{tpu_custom_call.1} parent=5 // pred_region
        %s259 = ssub.s32 %s16, 1
        %s260 = sand.u32 %s29, 1
        %s261 = scalar_lea.sflag [#allocation3], %s260
        %s262 = sand.u32 %s29, 1
        %s263 = smul.addr %s262, 128
        %s264 = scalar_lea.vmem [#allocation2], %s263
        // Predicated region
        $region49: #{tpu_custom_call.1} parent=47 // pred_check
          %p265 = pneg %p42
        $region50: #{tpu_custom_call.1} parent=47 // pred_check_branch
          %267 = sbr.rel (%p265) target = $region52
        $region51: #{tpu_custom_call.1} parent=47 // pred_region
          %268 = dma.done %s261, 2048
        $region52: #{tpu_custom_call.1} parent=47 // pred_fallthru
          _
        %s269 = sand.u32 %s29, 1
        %s270 = scalar_lea.sflag [#allocation3], %s269
        %s271 = sand.u32 %s29, 1
        %s272 = smul.addr %s271, 128
        %s273 = scalar_lea.vmem [#allocation2], %s272
        %p274 = pneg %p42
        %p275 = pneg %p39
        %p276 = pneg %p63
        %p277 = pneg %p60
        %p278 = pneg %p84
        %p279 = pneg %p81
        %p280 = pneg %p105
        %p281 = pneg %p102
        %p282 = pneg %p126
        %p283 = pneg %p123
        %p284 = pneg %p147
        %p285 = pneg %p144
        %p286 = pneg %p168
        %p287 = pneg %p165
        %p288 = pneg %p194
        %p289 = pneg %p191
        %s290 = smul.u32 4, %s21
        %p291 = scmp.lt.s32.totalorder %s290, 7
        %s292 = scalar_select %p291, %s290, 7
        %s293 = smul.addr %s292, 4
        %s294 = smul.addr %s293, 8
        %s295 = scalar_lea.vmem %s7, %s294
        %s296 = smul.u32 4, %s21
        %s297 = smul.u32 4, %s21
        %p298 = scmp.lt.s32.totalorder %s297, 7
        %s299 = scalar_select %p298, %s297, 7
        %s300 = smul.addr %s299, 4
        %s301 = smul.addr %s300, 8
        %s302 = scalar_lea.vmem %s7, %s301
        %s303 = smul.u32 4, %s21
        %v304 = vld [vmem:[%s264] sm:$0xff]
        %v305 = vld [vmem:[%s264 + $0x8] sm:$0xff]
        %v306 = vld [vmem:[%s264 + $0x10] sm:$0xff]
        %v307 = vld [vmem:[%s264 + $0x18] sm:$0xff]
        %v308 = vld [vmem:[%s264 + $0x20] sm:$0xff]
        %v309 = vld [vmem:[%s264 + $0x28] sm:$0xff]
        %v310 = vld [vmem:[%s264 + $0x30] sm:$0xff]
        %v311 = vld [vmem:[%s264 + $0x38] sm:$0xff]
        %v312 = vld [vmem:[%s264 + $0x40] sm:$0xff]
        %v313 = vld [vmem:[%s264 + $0x48] sm:$0xff]
        %v314 = vld [vmem:[%s264 + $0x50] sm:$0xff]
        %v315 = vld [vmem:[%s264 + $0x58] sm:$0xff]
        %v316 = vld [vmem:[%s264 + $0x60] sm:$0xff]
        %v317 = vld [vmem:[%s264 + $0x68] sm:$0xff]
        %v318 = vld [vmem:[%s264 + $0x70] sm:$0xff]
        %v319 = vld [vmem:[%s264 + $0x78] sm:$0xff]
        %v320 = vld [vmem:[%s1] sm:$0xff]
        %v321 = vld [vmem:[%s1 + $0x8] sm:$0xff]
        %v322 = vld [vmem:[%s1 + $0x10] sm:$0xff]
        %v323 = vld [vmem:[%s1 + $0x18] sm:$0xff]
        %v324 = vld [vmem:[%s1 + $0x20] sm:$0xff]
        %v325 = vld [vmem:[%s1 + $0x28] sm:$0xff]
        %v326 = vld [vmem:[%s1 + $0x30] sm:$0xff]
        %v327 = vld [vmem:[%s1 + $0x38] sm:$0xff]
        %v328 = vld [vmem:[%s4] sm:$0x1]
        %v330 = vlaneseq
        %v331 = vshrl.u32 %v330, 7
        %v332 = vsub.s32 0, %v331
        %v333 = vrot.slane %v328, %v332
        %vm335 = vcmask 523264
        %v337 = vsel %vm335, %v304, 0
        %v340 = vsel %vm335, %v305, 0
        %v343 = vsel %vm335, %v306, 0
        %v346 = vsel %vm335, %v307, 0
        %v349 = vsel %vm335, %v308, 0
        %v352 = vsel %vm335, %v309, 0
        %v355 = vsel %vm335, %v310, 0
        %v358 = vsel %vm335, %v311, 0
        %v361 = vsel %vm335, %v312, 0
        %v364 = vsel %vm335, %v313, 0
        %v367 = vsel %vm335, %v314, 0
        %v370 = vsel %vm335, %v315, 0
        %v373 = vsel %vm335, %v316, 0
        %v376 = vsel %vm335, %v317, 0
        %v379 = vsel %vm335, %v318, 0
        %v382 = vsel %vm335, %v319, 0
        %384 = vmatprep.subr.mxu0 0.0
        %385 = vmatpush1.msra.mxu0 0.0
        %386 = vmatprep.subr.mxu0 0.0
        %387 = vmatpush1.msra.mxu0 0.0
        %388 = vmatprep.subr.mxu0 0.0
        %389 = vmatpush1.msra.mxu0 0.0
        %390 = vmatprep.subr.mxu0 0.0
        %391 = vmatpush1.msra.mxu0 0.0
        %392 = vmatprep.subr.mxu0 0.0
        %393 = vmatpush1.msra.mxu0 0.0
        %394 = vmatprep.subr.mxu0 0.0
        %395 = vmatpush1.msra.mxu0 0.0
        %396 = vmatprep.subr.mxu0 0.0
        %397 = vmatpush1.msra.mxu0 0.0
        %398 = vmatprep.subr.mxu0 0.0
        %399 = vmatpush1.msra.mxu0 0.0
        %400 = vmatprep.subr.mxu0 0.0
        %401 = vmatpush1.msra.mxu0 %v327
        %402 = vmatprep.subr.mxu0 0.0
        %403 = vmatpush1.msra.mxu0 %v326
        %404 = vmatprep.subr.mxu0 0.0
        %405 = vmatpush1.msra.mxu0 %v325
        %406 = vmatprep.subr.mxu0 0.0
        %407 = vmatpush1.msra.mxu0 %v324
        %408 = vmatprep.subr.mxu0 0.0
        %409 = vmatpush1.msra.mxu0 %v323
        %410 = vmatprep.subr.mxu0 0.0
        %411 = vmatpush1.msra.mxu0 %v322
        %412 = vmatprep.subr.mxu0 0.0
        %413 = vmatpush1.msra.mxu0 %v321
        %414 = vmatprep.subr.mxu0 0.0
        %415 = vmatpush1.msra.mxu0 %v320
        %416 = vmatprep.subr.mxu0 0.0
        %417 = vmatpush2.msra.mxu0 0.0
        %418 = vmatprep.subr.mxu0 0.0
        %419 = vmatpush2.msra.mxu0 0.0
        %420 = vmatprep.subr.mxu0 0.0
        %421 = vmatpush2.msra.mxu0 0.0
        %422 = vmatprep.subr.mxu0 0.0
        %423 = vmatpush2.msra.mxu0 0.0
        %424 = vmatprep.subr.mxu0 0.0
        %425 = vmatpush2.msra.mxu0 0.0
        %426 = vmatprep.subr.mxu0 0.0
        %427 = vmatpush2.msra.mxu0 0.0
        %428 = vmatprep.subr.mxu0 0.0
        %429 = vmatpush2.msra.mxu0 0.0
        %430 = vmatprep.subr.mxu0 0.0
        %431 = vmatpush2.msra.mxu0 0.0
        %432 = vmatprep.subr.mxu0 0.0
        %433 = vmatpush2.msra.mxu0 0.0
        %434 = vmatprep.subr.mxu0 0.0
        %435 = vmatpush2.msra.mxu0 0.0
        %436 = vmatprep.subr.mxu0 0.0
        %437 = vmatpush2.msra.mxu0 0.0
        %438 = vmatprep.subr.mxu0 0.0
        %439 = vmatpush2.msra.mxu0 0.0
        %440 = vmatprep.subr.mxu0 0.0
        %441 = vmatpush2.msra.mxu0 0.0
        %442 = vmatprep.subr.mxu0 0.0
        %443 = vmatpush2.msra.mxu0 0.0
        %444 = vmatprep.subr.mxu0 0.0
        %445 = vmatpush2.msra.mxu0 0.0
        %446 = vmatprep.subr.mxu0 0.0
        %447 = vmatpush2.msra.mxu0 0.0
        %448 = vmatprep.mubr.f32.mxu0 0.0
        %449 = vmatmul.mubr.f32.gmra.mxu0 %v337
        %v450 = vpop.f32.mrf.mxu0
        %v451 = vadd.f32 %v333, %v450
        %v452 = vpop.f32.mrf.mxu0
        %453 = vmatprep.mubr.f32.mxu0 0.0
        %454 = vmatmul.mubr.f32.gmra.mxu0 %v340
        %v455 = vpop.f32.mrf.mxu0
        %v456 = vadd.f32 %v333, %v455
        %v457 = vpop.f32.mrf.mxu0
        %458 = vmatprep.mubr.f32.mxu0 0.0
        %459 = vmatmul.mubr.f32.gmra.mxu0 %v343
        %v460 = vpop.f32.mrf.mxu0
        %v461 = vadd.f32 %v333, %v460
        %v462 = vpop.f32.mrf.mxu0
        %463 = vmatprep.mubr.f32.mxu0 0.0
        %464 = vmatmul.mubr.f32.gmra.mxu0 %v346
        %v465 = vpop.f32.mrf.mxu0
        %v466 = vadd.f32 %v333, %v465
        %v467 = vpop.f32.mrf.mxu0
        %468 = vmatprep.mubr.f32.mxu0 0.0
        %469 = vmatmul.mubr.f32.gmra.mxu0 %v349
        %v470 = vpop.f32.mrf.mxu0
        %v471 = vadd.f32 %v333, %v470
        %v472 = vpop.f32.mrf.mxu0
        %473 = vmatprep.mubr.f32.mxu0 0.0
        %474 = vmatmul.mubr.f32.gmra.mxu0 %v352
        %v475 = vpop.f32.mrf.mxu0
        %v476 = vadd.f32 %v333, %v475
        %v477 = vpop.f32.mrf.mxu0
        %478 = vmatprep.mubr.f32.mxu0 0.0
        %479 = vmatmul.mubr.f32.gmra.mxu0 %v355
        %v480 = vpop.f32.mrf.mxu0
        %v481 = vadd.f32 %v333, %v480
        %v482 = vpop.f32.mrf.mxu0
        %483 = vmatprep.mubr.f32.mxu0 0.0
        %484 = vmatmul.mubr.f32.gmra.mxu0 %v358
        %v485 = vpop.f32.mrf.mxu0
        %v486 = vadd.f32 %v333, %v485
        %v487 = vpop.f32.mrf.mxu0
        %488 = vmatprep.mubr.f32.mxu0 0.0
        %489 = vmatmul.mubr.f32.gmra.mxu0 %v361
        %v490 = vpop.f32.mrf.mxu0
        %v491 = vadd.f32 %v333, %v490
        %v492 = vpop.f32.mrf.mxu0
        %493 = vmatprep.mubr.f32.mxu0 0.0
        %494 = vmatmul.mubr.f32.gmra.mxu0 %v364
        %v495 = vpop.f32.mrf.mxu0
        %v496 = vadd.f32 %v333, %v495
        %v497 = vpop.f32.mrf.mxu0
        %498 = vmatprep.mubr.f32.mxu0 0.0
        %499 = vmatmul.mubr.f32.gmra.mxu0 %v367
        %v500 = vpop.f32.mrf.mxu0
        %v501 = vadd.f32 %v333, %v500
        %v502 = vpop.f32.mrf.mxu0
        %503 = vmatprep.mubr.f32.mxu0 0.0
        %504 = vmatmul.mubr.f32.gmra.mxu0 %v370
        %v505 = vpop.f32.mrf.mxu0
        %v506 = vadd.f32 %v333, %v505
        %v507 = vpop.f32.mrf.mxu0
        %508 = vmatprep.mubr.f32.mxu0 0.0
        %509 = vmatmul.mubr.f32.gmra.mxu0 %v373
        %v510 = vpop.f32.mrf.mxu0
        %v511 = vadd.f32 %v333, %v510
        %v512 = vpop.f32.mrf.mxu0
        %513 = vmatprep.mubr.f32.mxu0 0.0
        %514 = vmatmul.mubr.f32.gmra.mxu0 %v376
        %v515 = vpop.f32.mrf.mxu0
        %v516 = vadd.f32 %v333, %v515
        %v517 = vpop.f32.mrf.mxu0
        %518 = vmatprep.mubr.f32.mxu0 0.0
        %519 = vmatmul.mubr.f32.gmra.mxu0 %v379
        %v520 = vpop.f32.mrf.mxu0
        %v521 = vadd.f32 %v333, %v520
        %v522 = vpop.f32.mrf.mxu0
        %523 = vmatprep.mubr.f32.mxu0 0.0
        %524 = vmatmul.mubr.f32.gmra.mxu0 %v382
        %v525 = vpop.f32.mrf.mxu0
        %v526 = vadd.f32 %v333, %v525
        %v527 = vpop.f32.mrf.mxu0
        %528 = vdwg.mxu0
        %v529 = vld [vmem:[%s2] sm:$0xff]
        %v530 = vld [vmem:[%s2 + $0x8] sm:$0xff]
        %v531 = vld [vmem:[%s2 + $0x10] sm:$0xff]
        %v532 = vld [vmem:[%s2 + $0x18] sm:$0xff]
        %v533 = vld [vmem:[%s2 + $0x20] sm:$0xff]
        %v534 = vld [vmem:[%s2 + $0x28] sm:$0xff]
        %v535 = vld [vmem:[%s2 + $0x30] sm:$0xff]
        %v536 = vld [vmem:[%s2 + $0x38] sm:$0xff]
        %v537 = vld [vmem:[%s5] sm:$0x1]
        %v539 = vlaneseq
        %v540 = vshrl.u32 %v539, 7
        %v541 = vsub.s32 0, %v540
        %v542 = vrot.slane %v537, %v541
        %544 = vmatprep.subr.mxu0 0.0
        %545 = vmatpush1.msra.mxu0 0.0
        %546 = vmatprep.subr.mxu0 0.0
        %547 = vmatpush1.msra.mxu0 0.0
        %548 = vmatprep.subr.mxu0 0.0
        %549 = vmatpush1.msra.mxu0 0.0
        %550 = vmatprep.subr.mxu0 0.0
        %551 = vmatpush1.msra.mxu0 0.0
        %552 = vmatprep.subr.mxu0 0.0
        %553 = vmatpush1.msra.mxu0 0.0
        %554 = vmatprep.subr.mxu0 0.0
        %555 = vmatpush1.msra.mxu0 0.0
        %556 = vmatprep.subr.mxu0 0.0
        %557 = vmatpush1.msra.mxu0 0.0
        %558 = vmatprep.subr.mxu0 0.0
        %559 = vmatpush1.msra.mxu0 0.0
        %560 = vmatprep.subr.mxu0 0.0
        %561 = vmatpush1.msra.mxu0 %v536
        %562 = vmatprep.subr.mxu0 0.0
        %563 = vmatpush1.msra.mxu0 %v535
        %564 = vmatprep.subr.mxu0 0.0
        %565 = vmatpush1.msra.mxu0 %v534
        %566 = vmatprep.subr.mxu0 0.0
        %567 = vmatpush1.msra.mxu0 %v533
        %568 = vmatprep.subr.mxu0 0.0
        %569 = vmatpush1.msra.mxu0 %v532
        %570 = vmatprep.subr.mxu0 0.0
        %571 = vmatpush1.msra.mxu0 %v531
        %572 = vmatprep.subr.mxu0 0.0
        %573 = vmatpush1.msra.mxu0 %v530
        %574 = vmatprep.subr.mxu0 0.0
        %575 = vmatpush1.msra.mxu0 %v529
        %576 = vmatprep.subr.mxu0 0.0
        %577 = vmatpush2.msra.mxu0 0.0
        %578 = vmatprep.subr.mxu0 0.0
        %579 = vmatpush2.msra.mxu0 0.0
        %580 = vmatprep.subr.mxu0 0.0
        %581 = vmatpush2.msra.mxu0 0.0
        %582 = vmatprep.subr.mxu0 0.0
        %583 = vmatpush2.msra.mxu0 0.0
        %584 = vmatprep.subr.mxu0 0.0
        %585 = vmatpush2.msra.mxu0 0.0
        %586 = vmatprep.subr.mxu0 0.0
        %587 = vmatpush2.msra.mxu0 0.0
        %588 = vmatprep.subr.mxu0 0.0
        %589 = vmatpush2.msra.mxu0 0.0
        %590 = vmatprep.subr.mxu0 0.0
        %591 = vmatpush2.msra.mxu0 0.0
        %592 = vmatprep.subr.mxu0 0.0
        %593 = vmatpush2.msra.mxu0 0.0
        %594 = vmatprep.subr.mxu0 0.0
        %595 = vmatpush2.msra.mxu0 0.0
        %596 = vmatprep.subr.mxu0 0.0
        %597 = vmatpush2.msra.mxu0 0.0
        %598 = vmatprep.subr.mxu0 0.0
        %599 = vmatpush2.msra.mxu0 0.0
        %600 = vmatprep.subr.mxu0 0.0
        %601 = vmatpush2.msra.mxu0 0.0
        %602 = vmatprep.subr.mxu0 0.0
        %603 = vmatpush2.msra.mxu0 0.0
        %604 = vmatprep.subr.mxu0 0.0
        %605 = vmatpush2.msra.mxu0 0.0
        %606 = vmatprep.subr.mxu0 0.0
        %607 = vmatpush2.msra.mxu0 0.0
        %608 = vmatprep.mubr.f32.mxu0 0.0
        %609 = vmatmul.mubr.f32.gmra.mxu0 %v337
        %v610 = vpop.f32.mrf.mxu0
        %v611 = vadd.f32 %v542, %v610
        %v612 = vpop.f32.mrf.mxu0
        %613 = vmatprep.mubr.f32.mxu0 0.0
        %614 = vmatmul.mubr.f32.gmra.mxu0 %v340
        %v615 = vpop.f32.mrf.mxu0
        %v616 = vadd.f32 %v542, %v615
        %v617 = vpop.f32.mrf.mxu0
        %618 = vmatprep.mubr.f32.mxu0 0.0
        %619 = vmatmul.mubr.f32.gmra.mxu0 %v343
        %v620 = vpop.f32.mrf.mxu0
        %v621 = vadd.f32 %v542, %v620
        %v622 = vpop.f32.mrf.mxu0
        %623 = vmatprep.mubr.f32.mxu0 0.0
        %624 = vmatmul.mubr.f32.gmra.mxu0 %v346
        %v625 = vpop.f32.mrf.mxu0
        %v626 = vadd.f32 %v542, %v625
        %v627 = vpop.f32.mrf.mxu0
        %628 = vmatprep.mubr.f32.mxu0 0.0
        %629 = vmatmul.mubr.f32.gmra.mxu0 %v349
        %v630 = vpop.f32.mrf.mxu0
        %v631 = vadd.f32 %v542, %v630
        %v632 = vpop.f32.mrf.mxu0
        %633 = vmatprep.mubr.f32.mxu0 0.0
        %634 = vmatmul.mubr.f32.gmra.mxu0 %v352
        %v635 = vpop.f32.mrf.mxu0
        %v636 = vadd.f32 %v542, %v635
        %v637 = vpop.f32.mrf.mxu0
        %638 = vmatprep.mubr.f32.mxu0 0.0
        %639 = vmatmul.mubr.f32.gmra.mxu0 %v355
        %v640 = vpop.f32.mrf.mxu0
        %v641 = vadd.f32 %v542, %v640
        %v642 = vpop.f32.mrf.mxu0
        %643 = vmatprep.mubr.f32.mxu0 0.0
        %644 = vmatmul.mubr.f32.gmra.mxu0 %v358
        %v645 = vpop.f32.mrf.mxu0
        %v646 = vadd.f32 %v542, %v645
        %v647 = vpop.f32.mrf.mxu0
        %648 = vmatprep.mubr.f32.mxu0 0.0
        %649 = vmatmul.mubr.f32.gmra.mxu0 %v361
        %v650 = vpop.f32.mrf.mxu0
        %v651 = vadd.f32 %v542, %v650
        %v652 = vpop.f32.mrf.mxu0
        %653 = vmatprep.mubr.f32.mxu0 0.0
        %654 = vmatmul.mubr.f32.gmra.mxu0 %v364
        %v655 = vpop.f32.mrf.mxu0
        %v656 = vadd.f32 %v542, %v655
        %v657 = vpop.f32.mrf.mxu0
        %658 = vmatprep.mubr.f32.mxu0 0.0
        %659 = vmatmul.mubr.f32.gmra.mxu0 %v367
        %v660 = vpop.f32.mrf.mxu0
        %v661 = vadd.f32 %v542, %v660
        %v662 = vpop.f32.mrf.mxu0
        %663 = vmatprep.mubr.f32.mxu0 0.0
        %664 = vmatmul.mubr.f32.gmra.mxu0 %v370
        %v665 = vpop.f32.mrf.mxu0
        %v666 = vadd.f32 %v542, %v665
        %v667 = vpop.f32.mrf.mxu0
        %668 = vmatprep.mubr.f32.mxu0 0.0
        %669 = vmatmul.mubr.f32.gmra.mxu0 %v373
        %v670 = vpop.f32.mrf.mxu0
        %v671 = vadd.f32 %v542, %v670
        %v672 = vpop.f32.mrf.mxu0
        %673 = vmatprep.mubr.f32.mxu0 0.0
        %674 = vmatmul.mubr.f32.gmra.mxu0 %v376
        %v675 = vpop.f32.mrf.mxu0
        %v676 = vadd.f32 %v542, %v675
        %v677 = vpop.f32.mrf.mxu0
        %678 = vmatprep.mubr.f32.mxu0 0.0
        %679 = vmatmul.mubr.f32.gmra.mxu0 %v379
        %v680 = vpop.f32.mrf.mxu0
        %v681 = vadd.f32 %v542, %v680
        %v682 = vpop.f32.mrf.mxu0
        %683 = vmatprep.mubr.f32.mxu0 0.0
        %684 = vmatmul.mubr.f32.gmra.mxu0 %v382
        %v685 = vpop.f32.mrf.mxu0
        %v686 = vadd.f32 %v542, %v685
        %v687 = vpop.f32.mrf.mxu0
        %688 = vdwg.mxu0
        %v689 = vld [vmem:[%s3] sm:$0xff]
        %v690 = vld [vmem:[%s3 + $0x8] sm:$0xff]
        %v691 = vld [vmem:[%s3 + $0x10] sm:$0xff]
        %v692 = vld [vmem:[%s3 + $0x18] sm:$0xff]
        %v693 = vld [vmem:[%s3 + $0x20] sm:$0xff]
        %v694 = vld [vmem:[%s3 + $0x28] sm:$0xff]
        %v695 = vld [vmem:[%s3 + $0x30] sm:$0xff]
        %v696 = vld [vmem:[%s3 + $0x38] sm:$0xff]
        %v697 = vld [vmem:[%s6] sm:$0x1]
        %v699 = vlaneseq
        %v700 = vshrl.u32 %v699, 7
        %v701 = vsub.s32 0, %v700
        %v702 = vrot.slane %v697, %v701
        %704 = vmatprep.subr.mxu0 0.0
        %705 = vmatpush1.msra.mxu0 0.0
        %706 = vmatprep.subr.mxu0 0.0
        %707 = vmatpush1.msra.mxu0 0.0
        %708 = vmatprep.subr.mxu0 0.0
        %709 = vmatpush1.msra.mxu0 0.0
        %710 = vmatprep.subr.mxu0 0.0
        %711 = vmatpush1.msra.mxu0 0.0
        %712 = vmatprep.subr.mxu0 0.0
        %713 = vmatpush1.msra.mxu0 0.0
        %714 = vmatprep.subr.mxu0 0.0
        %715 = vmatpush1.msra.mxu0 0.0
        %716 = vmatprep.subr.mxu0 0.0
        %717 = vmatpush1.msra.mxu0 0.0
        %718 = vmatprep.subr.mxu0 0.0
        %719 = vmatpush1.msra.mxu0 0.0
        %720 = vmatprep.subr.mxu0 0.0
        %721 = vmatpush1.msra.mxu0 %v696
        %722 = vmatprep.subr.mxu0 0.0
        %723 = vmatpush1.msra.mxu0 %v695
        %724 = vmatprep.subr.mxu0 0.0
        %725 = vmatpush1.msra.mxu0 %v694
        %726 = vmatprep.subr.mxu0 0.0
        %727 = vmatpush1.msra.mxu0 %v693
        %728 = vmatprep.subr.mxu0 0.0
        %729 = vmatpush1.msra.mxu0 %v692
        %730 = vmatprep.subr.mxu0 0.0
        %731 = vmatpush1.msra.mxu0 %v691
        %732 = vmatprep.subr.mxu0 0.0
        %733 = vmatpush1.msra.mxu0 %v690
        %734 = vmatprep.subr.mxu0 0.0
        %735 = vmatpush1.msra.mxu0 %v689
        %736 = vmatprep.subr.mxu0 0.0
        %737 = vmatpush2.msra.mxu0 0.0
        %738 = vmatprep.subr.mxu0 0.0
        %739 = vmatpush2.msra.mxu0 0.0
        %740 = vmatprep.subr.mxu0 0.0
        %741 = vmatpush2.msra.mxu0 0.0
        %742 = vmatprep.subr.mxu0 0.0
        %743 = vmatpush2.msra.mxu0 0.0
        %744 = vmatprep.subr.mxu0 0.0
        %745 = vmatpush2.msra.mxu0 0.0
        %746 = vmatprep.subr.mxu0 0.0
        %747 = vmatpush2.msra.mxu0 0.0
        %748 = vmatprep.subr.mxu0 0.0
        %749 = vmatpush2.msra.mxu0 0.0
        %750 = vmatprep.subr.mxu0 0.0
        %751 = vmatpush2.msra.mxu0 0.0
        %752 = vmatprep.subr.mxu0 0.0
        %753 = vmatpush2.msra.mxu0 0.0
        %754 = vmatprep.subr.mxu0 0.0
        %755 = vmatpush2.msra.mxu0 0.0
        %756 = vmatprep.subr.mxu0 0.0
        %757 = vmatpush2.msra.mxu0 0.0
        %758 = vmatprep.subr.mxu0 0.0
        %759 = vmatpush2.msra.mxu0 0.0
        %760 = vmatprep.subr.mxu0 0.0
        %761 = vmatpush2.msra.mxu0 0.0
        %762 = vmatprep.subr.mxu0 0.0
        %763 = vmatpush2.msra.mxu0 0.0
        %764 = vmatprep.subr.mxu0 0.0
        %765 = vmatpush2.msra.mxu0 0.0
        %766 = vmatprep.subr.mxu0 0.0
        %767 = vmatpush2.msra.mxu0 0.0
        %768 = vmatprep.mubr.f32.mxu0 0.0
        %769 = vmatmul.mubr.f32.gmra.mxu0 %v337
        %v770 = vpop.f32.mrf.mxu0
        %v771 = vadd.f32 %v702, %v770
        %v772 = vpop.f32.mrf.mxu0
        %773 = vmatprep.mubr.f32.mxu0 0.0
        %774 = vmatmul.mubr.f32.gmra.mxu0 %v340
        %v775 = vpop.f32.mrf.mxu0
        %v776 = vadd.f32 %v702, %v775
        %v777 = vpop.f32.mrf.mxu0
        %778 = vmatprep.mubr.f32.mxu0 0.0
        %779 = vmatmul.mubr.f32.gmra.mxu0 %v343
        %v780 = vpop.f32.mrf.mxu0
        %v781 = vadd.f32 %v702, %v780
        %v782 = vpop.f32.mrf.mxu0
        %783 = vmatprep.mubr.f32.mxu0 0.0
        %784 = vmatmul.mubr.f32.gmra.mxu0 %v346
        %v785 = vpop.f32.mrf.mxu0
        %v786 = vadd.f32 %v702, %v785
        %v787 = vpop.f32.mrf.mxu0
        %788 = vmatprep.mubr.f32.mxu0 0.0
        %789 = vmatmul.mubr.f32.gmra.mxu0 %v349
        %v790 = vpop.f32.mrf.mxu0
        %v791 = vadd.f32 %v702, %v790
        %v792 = vpop.f32.mrf.mxu0
        %793 = vmatprep.mubr.f32.mxu0 0.0
        %794 = vmatmul.mubr.f32.gmra.mxu0 %v352
        %v795 = vpop.f32.mrf.mxu0
        %v796 = vadd.f32 %v702, %v795
        %v797 = vpop.f32.mrf.mxu0
        %798 = vmatprep.mubr.f32.mxu0 0.0
        %799 = vmatmul.mubr.f32.gmra.mxu0 %v355
        %v800 = vpop.f32.mrf.mxu0
        %v801 = vadd.f32 %v702, %v800
        %v802 = vpop.f32.mrf.mxu0
        %803 = vmatprep.mubr.f32.mxu0 0.0
        %804 = vmatmul.mubr.f32.gmra.mxu0 %v358
        %v805 = vpop.f32.mrf.mxu0
        %v806 = vadd.f32 %v702, %v805
        %v807 = vpop.f32.mrf.mxu0
        %808 = vmatprep.mubr.f32.mxu0 0.0
        %809 = vmatmul.mubr.f32.gmra.mxu0 %v361
        %v810 = vpop.f32.mrf.mxu0
        %v811 = vadd.f32 %v702, %v810
        %v812 = vpop.f32.mrf.mxu0
        %813 = vmatprep.mubr.f32.mxu0 0.0
        %814 = vmatmul.mubr.f32.gmra.mxu0 %v364
        %v815 = vpop.f32.mrf.mxu0
        %v816 = vadd.f32 %v702, %v815
        %v817 = vpop.f32.mrf.mxu0
        %818 = vmatprep.mubr.f32.mxu0 0.0
        %819 = vmatmul.mubr.f32.gmra.mxu0 %v367
        %v820 = vpop.f32.mrf.mxu0
        %v821 = vadd.f32 %v702, %v820
        %v822 = vpop.f32.mrf.mxu0
        %823 = vmatprep.mubr.f32.mxu0 0.0
        %824 = vmatmul.mubr.f32.gmra.mxu0 %v370
        %v825 = vpop.f32.mrf.mxu0
        %v826 = vadd.f32 %v702, %v825
        %v827 = vpop.f32.mrf.mxu0
        %828 = vmatprep.mubr.f32.mxu0 0.0
        %829 = vmatmul.mubr.f32.gmra.mxu0 %v373
        %v830 = vpop.f32.mrf.mxu0
        %v831 = vadd.f32 %v702, %v830
        %v832 = vpop.f32.mrf.mxu0
        %833 = vmatprep.mubr.f32.mxu0 0.0
        %834 = vmatmul.mubr.f32.gmra.mxu0 %v376
        %v835 = vpop.f32.mrf.mxu0
        %v836 = vadd.f32 %v702, %v835
        %v837 = vpop.f32.mrf.mxu0
        %838 = vmatprep.mubr.f32.mxu0 0.0
        %839 = vmatmul.mubr.f32.gmra.mxu0 %v379
        %v840 = vpop.f32.mrf.mxu0
        %v841 = vadd.f32 %v702, %v840
        %v842 = vpop.f32.mrf.mxu0
        %843 = vmatprep.mubr.f32.mxu0 0.0
        %844 = vmatmul.mubr.f32.gmra.mxu0 %v382
        %v845 = vpop.f32.mrf.mxu0
        %v846 = vadd.f32 %v702, %v845
        %v847 = vpop.f32.mrf.mxu0
        %848 = vdwg.mxu0
        %vm849 = vcmask 130048
        %v851 = vsel %vm849, %v611, 0
        %v854 = vsel %vm849, %v616, 0
        %v857 = vsel %vm849, %v621, 0
        %v860 = vsel %vm849, %v626, 0
        %v863 = vsel %vm849, %v451, 0
        %v866 = vsel %vm849, %v456, 0
        %v869 = vsel %vm849, %v461, 0
        %v872 = vsel %vm849, %v466, 0
        %874 = vmatprep.subr.mxu0 0.0
        %875 = vmatpush1.xpose.msra.mxu0 0.0
        %876 = vmatprep.subr.mxu0 0.0
        %877 = vmatpush1.xpose.msra.mxu0 0.0
        %878 = vmatprep.subr.mxu0 0.0
        %879 = vmatpush1.xpose.msra.mxu0 0.0
        %880 = vmatprep.subr.mxu0 0.0
        %881 = vmatpush1.xpose.msra.mxu0 0.0
        %882 = vmatprep.subr.mxu0 0.0
        %883 = vmatpush1.xpose.msra.mxu0 0.0
        %884 = vmatprep.subr.mxu0 0.0
        %885 = vmatpush1.xpose.msra.mxu0 0.0
        %886 = vmatprep.subr.mxu0 0.0
        %887 = vmatpush1.xpose.msra.mxu0 0.0
        %888 = vmatprep.subr.mxu0 0.0
        %889 = vmatpush1.xpose.msra.mxu0 0.0
        %890 = vmatprep.subr.mxu0 0.0
        %891 = vmatpush1.xpose.msra.mxu0 0.0
        %892 = vmatprep.subr.mxu0 0.0
        %893 = vmatpush1.xpose.msra.mxu0 0.0
        %894 = vmatprep.subr.mxu0 0.0
        %895 = vmatpush1.xpose.msra.mxu0 0.0
        %896 = vmatprep.subr.mxu0 0.0
        %897 = vmatpush1.xpose.msra.mxu0 0.0
        %898 = vmatprep.subr.mxu0 0.0
        %899 = vmatpush1.xpose.msra.mxu0 %v872
        %900 = vmatprep.subr.mxu0 0.0
        %901 = vmatpush1.xpose.msra.mxu0 %v869
        %902 = vmatprep.subr.mxu0 0.0
        %903 = vmatpush1.xpose.msra.mxu0 %v866
        %904 = vmatprep.subr.mxu0 0.0
        %905 = vmatpush1.xpose.msra.mxu0 %v863
        %906 = vmatprep.subr.mxu0 0.0
        %907 = vmatpush2.xpose.msra.mxu0 0.0
        %908 = vmatprep.subr.mxu0 0.0
        %909 = vmatpush2.xpose.msra.mxu0 0.0
        %910 = vmatprep.subr.mxu0 0.0
        %911 = vmatpush2.xpose.msra.mxu0 0.0
        %912 = vmatprep.subr.mxu0 0.0
        %913 = vmatpush2.xpose.msra.mxu0 0.0
        %914 = vmatprep.subr.mxu0 0.0
        %915 = vmatpush2.xpose.msra.mxu0 0.0
        %916 = vmatprep.subr.mxu0 0.0
        %917 = vmatpush2.xpose.msra.mxu0 0.0
        %918 = vmatprep.subr.mxu0 0.0
        %919 = vmatpush2.xpose.msra.mxu0 0.0
        %920 = vmatprep.subr.mxu0 0.0
        %921 = vmatpush2.xpose.msra.mxu0 0.0
        %922 = vmatprep.subr.mxu0 0.0
        %923 = vmatpush2.xpose.msra.mxu0 0.0
        %924 = vmatprep.subr.mxu0 0.0
        %925 = vmatpush2.xpose.msra.mxu0 0.0
        %926 = vmatprep.subr.mxu0 0.0
        %927 = vmatpush2.xpose.msra.mxu0 0.0
        %928 = vmatprep.subr.mxu0 0.0
        %929 = vmatpush2.xpose.msra.mxu0 0.0
        %930 = vmatprep.subr.mxu0 0.0
        %931 = vmatpush2.xpose.msra.mxu0 0.0
        %932 = vmatprep.subr.mxu0 0.0
        %933 = vmatpush2.xpose.msra.mxu0 0.0
        %934 = vmatprep.subr.mxu0 0.0
        %935 = vmatpush2.xpose.msra.mxu0 0.0
        %936 = vmatprep.subr.mxu0 0.0
        %937 = vmatpush2.xpose.msra.mxu0 0.0
        %938 = vmatprep.mubr.f32.mxu0 0.0
        %939 = vmatmul.mubr.f32.gmra.mxu0 %v851
        %v940 = vpop.f32.mrf.mxu0
        %v941 = vadd.f32 0.0, %v940
        %v942 = vpop.f32.mrf.mxu0
        %943 = vmatprep.mubr.f32.mxu0 0.0
        %944 = vmatmul.mubr.f32.gmra.mxu0 %v854
        %v945 = vpop.f32.mrf.mxu0
        %v946 = vadd.f32 0.0, %v945
        %v947 = vpop.f32.mrf.mxu0
        %948 = vmatprep.mubr.f32.mxu0 0.0
        %949 = vmatmul.mubr.f32.gmra.mxu0 %v857
        %v950 = vpop.f32.mrf.mxu0
        %v951 = vadd.f32 0.0, %v950
        %v952 = vpop.f32.mrf.mxu0
        %953 = vmatprep.mubr.f32.mxu0 0.0
        %954 = vmatmul.mubr.f32.gmra.mxu0 %v860
        %v955 = vpop.f32.mrf.mxu0
        %v956 = vadd.f32 0.0, %v955
        %v957 = vpop.f32.mrf.mxu0
        %958 = vdwg.mxu0
        %v960 = vsel %vm849, %v631, 0
        %v963 = vsel %vm849, %v636, 0
        %v966 = vsel %vm849, %v641, 0
        %v969 = vsel %vm849, %v646, 0
        %v972 = vsel %vm849, %v471, 0
        %v975 = vsel %vm849, %v476, 0
        %v978 = vsel %vm849, %v481, 0
        %v981 = vsel %vm849, %v486, 0
        %983 = vmatprep.subr.mxu0 0.0
        %984 = vmatpush1.xpose.msra.mxu0 0.0
        %985 = vmatprep.subr.mxu0 0.0
        %986 = vmatpush1.xpose.msra.mxu0 0.0
        %987 = vmatprep.subr.mxu0 0.0
        %988 = vmatpush1.xpose.msra.mxu0 0.0
        %989 = vmatprep.subr.mxu0 0.0
        %990 = vmatpush1.xpose.msra.mxu0 0.0
        %991 = vmatprep.subr.mxu0 0.0
        %992 = vmatpush1.xpose.msra.mxu0 0.0
        %993 = vmatprep.subr.mxu0 0.0
        %994 = vmatpush1.xpose.msra.mxu0 0.0
        %995 = vmatprep.subr.mxu0 0.0
        %996 = vmatpush1.xpose.msra.mxu0 0.0
        %997 = vmatprep.subr.mxu0 0.0
        %998 = vmatpush1.xpose.msra.mxu0 0.0
        %999 = vmatprep.subr.mxu0 0.0
        %1000 = vmatpush1.xpose.msra.mxu0 0.0
        %1001 = vmatprep.subr.mxu0 0.0
        %1002 = vmatpush1.xpose.msra.mxu0 0.0
        %1003 = vmatprep.subr.mxu0 0.0
        %1004 = vmatpush1.xpose.msra.mxu0 0.0
        %1005 = vmatprep.subr.mxu0 0.0
        %1006 = vmatpush1.xpose.msra.mxu0 0.0
        %1007 = vmatprep.subr.mxu0 0.0
        %1008 = vmatpush1.xpose.msra.mxu0 %v981
        %1009 = vmatprep.subr.mxu0 0.0
        %1010 = vmatpush1.xpose.msra.mxu0 %v978
        %1011 = vmatprep.subr.mxu0 0.0
        %1012 = vmatpush1.xpose.msra.mxu0 %v975
        %1013 = vmatprep.subr.mxu0 0.0
        %1014 = vmatpush1.xpose.msra.mxu0 %v972
        %1015 = vmatprep.subr.mxu0 0.0
        %1016 = vmatpush2.xpose.msra.mxu0 0.0
        %1017 = vmatprep.subr.mxu0 0.0
        %1018 = vmatpush2.xpose.msra.mxu0 0.0
        %1019 = vmatprep.subr.mxu0 0.0
        %1020 = vmatpush2.xpose.msra.mxu0 0.0
        %1021 = vmatprep.subr.mxu0 0.0
        %1022 = vmatpush2.xpose.msra.mxu0 0.0
        %1023 = vmatprep.subr.mxu0 0.0
        %1024 = vmatpush2.xpose.msra.mxu0 0.0
        %1025 = vmatprep.subr.mxu0 0.0
        %1026 = vmatpush2.xpose.msra.mxu0 0.0
        %1027 = vmatprep.subr.mxu0 0.0
        %1028 = vmatpush2.xpose.msra.mxu0 0.0
        %1029 = vmatprep.subr.mxu0 0.0
        %1030 = vmatpush2.xpose.msra.mxu0 0.0
        %1031 = vmatprep.subr.mxu0 0.0
        %1032 = vmatpush2.xpose.msra.mxu0 0.0
        %1033 = vmatprep.subr.mxu0 0.0
        %1034 = vmatpush2.xpose.msra.mxu0 0.0
        %1035 = vmatprep.subr.mxu0 0.0
        %1036 = vmatpush2.xpose.msra.mxu0 0.0
        %1037 = vmatprep.subr.mxu0 0.0
        %1038 = vmatpush2.xpose.msra.mxu0 0.0
        %1039 = vmatprep.subr.mxu0 0.0
        %1040 = vmatpush2.xpose.msra.mxu0 0.0
        %1041 = vmatprep.subr.mxu0 0.0
        %1042 = vmatpush2.xpose.msra.mxu0 0.0
        %1043 = vmatprep.subr.mxu0 0.0
        %1044 = vmatpush2.xpose.msra.mxu0 0.0
        %1045 = vmatprep.subr.mxu0 0.0
        %1046 = vmatpush2.xpose.msra.mxu0 0.0
        %1047 = vmatprep.mubr.f32.mxu0 0.0
        %1048 = vmatmul.mubr.f32.gmra.mxu0 %v960
        %v1049 = vpop.f32.mrf.mxu0
        %v1050 = vadd.f32 0.0, %v1049
        %v1051 = vpop.f32.mrf.mxu0
        %1052 = vmatprep.mubr.f32.mxu0 0.0
        %1053 = vmatmul.mubr.f32.gmra.mxu0 %v963
        %v1054 = vpop.f32.mrf.mxu0
        %v1055 = vadd.f32 0.0, %v1054
        %v1056 = vpop.f32.mrf.mxu0
        %1057 = vmatprep.mubr.f32.mxu0 0.0
        %1058 = vmatmul.mubr.f32.gmra.mxu0 %v966
        %v1059 = vpop.f32.mrf.mxu0
        %v1060 = vadd.f32 0.0, %v1059
        %v1061 = vpop.f32.mrf.mxu0
        %1062 = vmatprep.mubr.f32.mxu0 0.0
        %1063 = vmatmul.mubr.f32.gmra.mxu0 %v969
        %v1064 = vpop.f32.mrf.mxu0
        %v1065 = vadd.f32 0.0, %v1064
        %v1066 = vpop.f32.mrf.mxu0
        %1067 = vdwg.mxu0
        %v1069 = vsel %vm849, %v651, 0
        %v1072 = vsel %vm849, %v656, 0
        %v1075 = vsel %vm849, %v661, 0
        %v1078 = vsel %vm849, %v666, 0
        %v1081 = vsel %vm849, %v491, 0
        %v1084 = vsel %vm849, %v496, 0
        %v1087 = vsel %vm849, %v501, 0
        %v1090 = vsel %vm849, %v506, 0
        %1092 = vmatprep.subr.mxu0 0.0
        %1093 = vmatpush1.xpose.msra.mxu0 0.0
        %1094 = vmatprep.subr.mxu0 0.0
        %1095 = vmatpush1.xpose.msra.mxu0 0.0
        %1096 = vmatprep.subr.mxu0 0.0
        %1097 = vmatpush1.xpose.msra.mxu0 0.0
        %1098 = vmatprep.subr.mxu0 0.0
        %1099 = vmatpush1.xpose.msra.mxu0 0.0
        %1100 = vmatprep.subr.mxu0 0.0
        %1101 = vmatpush1.xpose.msra.mxu0 0.0
        %1102 = vmatprep.subr.mxu0 0.0
        %1103 = vmatpush1.xpose.msra.mxu0 0.0
        %1104 = vmatprep.subr.mxu0 0.0
        %1105 = vmatpush1.xpose.msra.mxu0 0.0
        %1106 = vmatprep.subr.mxu0 0.0
        %1107 = vmatpush1.xpose.msra.mxu0 0.0
        %1108 = vmatprep.subr.mxu0 0.0
        %1109 = vmatpush1.xpose.msra.mxu0 0.0
        %1110 = vmatprep.subr.mxu0 0.0
        %1111 = vmatpush1.xpose.msra.mxu0 0.0
        %1112 = vmatprep.subr.mxu0 0.0
        %1113 = vmatpush1.xpose.msra.mxu0 0.0
        %1114 = vmatprep.subr.mxu0 0.0
        %1115 = vmatpush1.xpose.msra.mxu0 0.0
        %1116 = vmatprep.subr.mxu0 0.0
        %1117 = vmatpush1.xpose.msra.mxu0 %v1090
        %1118 = vmatprep.subr.mxu0 0.0
        %1119 = vmatpush1.xpose.msra.mxu0 %v1087
        %1120 = vmatprep.subr.mxu0 0.0
        %1121 = vmatpush1.xpose.msra.mxu0 %v1084
        %1122 = vmatprep.subr.mxu0 0.0
        %1123 = vmatpush1.xpose.msra.mxu0 %v1081
        %1124 = vmatprep.subr.mxu0 0.0
        %1125 = vmatpush2.xpose.msra.mxu0 0.0
        %1126 = vmatprep.subr.mxu0 0.0
        %1127 = vmatpush2.xpose.msra.mxu0 0.0
        %1128 = vmatprep.subr.mxu0 0.0
        %1129 = vmatpush2.xpose.msra.mxu0 0.0
        %1130 = vmatprep.subr.mxu0 0.0
        %1131 = vmatpush2.xpose.msra.mxu0 0.0
        %1132 = vmatprep.subr.mxu0 0.0
        %1133 = vmatpush2.xpose.msra.mxu0 0.0
        %1134 = vmatprep.subr.mxu0 0.0
        %1135 = vmatpush2.xpose.msra.mxu0 0.0
        %1136 = vmatprep.subr.mxu0 0.0
        %1137 = vmatpush2.xpose.msra.mxu0 0.0
        %1138 = vmatprep.subr.mxu0 0.0
        %1139 = vmatpush2.xpose.msra.mxu0 0.0
        %1140 = vmatprep.subr.mxu0 0.0
        %1141 = vmatpush2.xpose.msra.mxu0 0.0
        %1142 = vmatprep.subr.mxu0 0.0
        %1143 = vmatpush2.xpose.msra.mxu0 0.0
        %1144 = vmatprep.subr.mxu0 0.0
        %1145 = vmatpush2.xpose.msra.mxu0 0.0
        %1146 = vmatprep.subr.mxu0 0.0
        %1147 = vmatpush2.xpose.msra.mxu0 0.0
        %1148 = vmatprep.subr.mxu0 0.0
        %1149 = vmatpush2.xpose.msra.mxu0 0.0
        %1150 = vmatprep.subr.mxu0 0.0
        %1151 = vmatpush2.xpose.msra.mxu0 0.0
        %1152 = vmatprep.subr.mxu0 0.0
        %1153 = vmatpush2.xpose.msra.mxu0 0.0
        %1154 = vmatprep.subr.mxu0 0.0
        %1155 = vmatpush2.xpose.msra.mxu0 0.0
        %1156 = vmatprep.mubr.f32.mxu0 0.0
        %1157 = vmatmul.mubr.f32.gmra.mxu0 %v1069
        %v1158 = vpop.f32.mrf.mxu0
        %v1159 = vadd.f32 0.0, %v1158
        %v1160 = vpop.f32.mrf.mxu0
        %1161 = vmatprep.mubr.f32.mxu0 0.0
        %1162 = vmatmul.mubr.f32.gmra.mxu0 %v1072
        %v1163 = vpop.f32.mrf.mxu0
        %v1164 = vadd.f32 0.0, %v1163
        %v1165 = vpop.f32.mrf.mxu0
        %1166 = vmatprep.mubr.f32.mxu0 0.0
        %1167 = vmatmul.mubr.f32.gmra.mxu0 %v1075
        %v1168 = vpop.f32.mrf.mxu0
        %v1169 = vadd.f32 0.0, %v1168
        %v1170 = vpop.f32.mrf.mxu0
        %1171 = vmatprep.mubr.f32.mxu0 0.0
        %1172 = vmatmul.mubr.f32.gmra.mxu0 %v1078
        %v1173 = vpop.f32.mrf.mxu0
        %v1174 = vadd.f32 0.0, %v1173
        %v1175 = vpop.f32.mrf.mxu0
        %1176 = vdwg.mxu0
        %v1178 = vsel %vm849, %v671, 0
        %v1181 = vsel %vm849, %v676, 0
        %v1184 = vsel %vm849, %v681, 0
        %v1187 = vsel %vm849, %v686, 0
        %v1190 = vsel %vm849, %v511, 0
        %v1193 = vsel %vm849, %v516, 0
        %v1196 = vsel %vm849, %v521, 0
        %v1199 = vsel %vm849, %v526, 0
        %1201 = vmatprep.subr.mxu0 0.0
        %1202 = vmatpush1.xpose.msra.mxu0 0.0
        %1203 = vmatprep.subr.mxu0 0.0
        %1204 = vmatpush1.xpose.msra.mxu0 0.0
        %1205 = vmatprep.subr.mxu0 0.0
        %1206 = vmatpush1.xpose.msra.mxu0 0.0
        %1207 = vmatprep.subr.mxu0 0.0
        %1208 = vmatpush1.xpose.msra.mxu0 0.0
        %1209 = vmatprep.subr.mxu0 0.0
        %1210 = vmatpush1.xpose.msra.mxu0 0.0
        %1211 = vmatprep.subr.mxu0 0.0
        %1212 = vmatpush1.xpose.msra.mxu0 0.0
        %1213 = vmatprep.subr.mxu0 0.0
        %1214 = vmatpush1.xpose.msra.mxu0 0.0
        %1215 = vmatprep.subr.mxu0 0.0
        %1216 = vmatpush1.xpose.msra.mxu0 0.0
        %1217 = vmatprep.subr.mxu0 0.0
        %1218 = vmatpush1.xpose.msra.mxu0 0.0
        %1219 = vmatprep.subr.mxu0 0.0
        %1220 = vmatpush1.xpose.msra.mxu0 0.0
        %1221 = vmatprep.subr.mxu0 0.0
        %1222 = vmatpush1.xpose.msra.mxu0 0.0
        %1223 = vmatprep.subr.mxu0 0.0
        %1224 = vmatpush1.xpose.msra.mxu0 0.0
        %1225 = vmatprep.subr.mxu0 0.0
        %1226 = vmatpush1.xpose.msra.mxu0 %v1199
        %1227 = vmatprep.subr.mxu0 0.0
        %1228 = vmatpush1.xpose.msra.mxu0 %v1196
        %1229 = vmatprep.subr.mxu0 0.0
        %1230 = vmatpush1.xpose.msra.mxu0 %v1193
        %1231 = vmatprep.subr.mxu0 0.0
        %1232 = vmatpush1.xpose.msra.mxu0 %v1190
        %1233 = vmatprep.subr.mxu0 0.0
        %1234 = vmatpush2.xpose.msra.mxu0 0.0
        %1235 = vmatprep.subr.mxu0 0.0
        %1236 = vmatpush2.xpose.msra.mxu0 0.0
        %1237 = vmatprep.subr.mxu0 0.0
        %1238 = vmatpush2.xpose.msra.mxu0 0.0
        %1239 = vmatprep.subr.mxu0 0.0
        %1240 = vmatpush2.xpose.msra.mxu0 0.0
        %1241 = vmatprep.subr.mxu0 0.0
        %1242 = vmatpush2.xpose.msra.mxu0 0.0
        %1243 = vmatprep.subr.mxu0 0.0
        %1244 = vmatpush2.xpose.msra.mxu0 0.0
        %1245 = vmatprep.subr.mxu0 0.0
        %1246 = vmatpush2.xpose.msra.mxu0 0.0
        %1247 = vmatprep.subr.mxu0 0.0
        %1248 = vmatpush2.xpose.msra.mxu0 0.0
        %1249 = vmatprep.subr.mxu0 0.0
        %1250 = vmatpush2.xpose.msra.mxu0 0.0
        %1251 = vmatprep.subr.mxu0 0.0
        %1252 = vmatpush2.xpose.msra.mxu0 0.0
        %1253 = vmatprep.subr.mxu0 0.0
        %1254 = vmatpush2.xpose.msra.mxu0 0.0
        %1255 = vmatprep.subr.mxu0 0.0
        %1256 = vmatpush2.xpose.msra.mxu0 0.0
        %1257 = vmatprep.subr.mxu0 0.0
        %1258 = vmatpush2.xpose.msra.mxu0 0.0
        %1259 = vmatprep.subr.mxu0 0.0
        %1260 = vmatpush2.xpose.msra.mxu0 0.0
        %1261 = vmatprep.subr.mxu0 0.0
        %1262 = vmatpush2.xpose.msra.mxu0 0.0
        %1263 = vmatprep.subr.mxu0 0.0
        %1264 = vmatpush2.xpose.msra.mxu0 0.0
        %1265 = vmatprep.mubr.f32.mxu0 0.0
        %1266 = vmatmul.mubr.f32.gmra.mxu0 %v1178
        %v1267 = vpop.f32.mrf.mxu0
        %v1268 = vadd.f32 0.0, %v1267
        %v1269 = vpop.f32.mrf.mxu0
        %1270 = vmatprep.mubr.f32.mxu0 0.0
        %1271 = vmatmul.mubr.f32.gmra.mxu0 %v1181
        %v1272 = vpop.f32.mrf.mxu0
        %v1273 = vadd.f32 0.0, %v1272
        %v1274 = vpop.f32.mrf.mxu0
        %1275 = vmatprep.mubr.f32.mxu0 0.0
        %1276 = vmatmul.mubr.f32.gmra.mxu0 %v1184
        %v1277 = vpop.f32.mrf.mxu0
        %v1278 = vadd.f32 0.0, %v1277
        %v1279 = vpop.f32.mrf.mxu0
        %1280 = vmatprep.mubr.f32.mxu0 0.0
        %1281 = vmatmul.mubr.f32.gmra.mxu0 %v1187
        %v1282 = vpop.f32.mrf.mxu0
        %v1283 = vadd.f32 0.0, %v1282
        %v1284 = vpop.f32.mrf.mxu0
        %1285 = vdwg.mxu0
        %v1286 = vlaneseq
        %v1287 = vshrl.u32 %v1286, 7
        %v1288 = vadd.s32 %v1287, 8
        %v1289 = vadd.s32 %v1287, 16
        %v1290 = vadd.s32 %v1287, 24
        %v1291 = vlaneseq
        %v1292 = vand.u32 %v1291, 127
        %vm1293 = vcmp.le.s32.totalorder %v1292, %v1287
        %vm1294 = vcmp.le.s32.totalorder %v1292, %v1288
        %vm1295 = vcmp.le.s32.totalorder %v1292, %v1289
        %vm1296 = vcmp.le.s32.totalorder %v1292, %v1290
        %v1297 = vsel %vm1293, 1, 0
        %v1298 = vsel %vm1294, 1, 0
        %v1299 = vsel %vm1295, 1, 0
        %v1300 = vsel %vm1296, 1, 0
        %vm1301 = vcmp.eq.s32.totalorder %v1297, 1
        %vm1302 = vcmp.eq.s32.totalorder %v1298, 1
        %vm1303 = vcmp.eq.s32.totalorder %v1299, 1
        %vm1304 = vcmp.eq.s32.totalorder %v1300, 1
        %v1305 = vsel %vm1301, %v941, -inf
        %v1306 = vsel %vm1302, %v946, -inf
        %v1307 = vsel %vm1303, %v951, -inf
        %v1308 = vsel %vm1304, %v956, -inf
        %v1309 = vsel %vm1301, %v1050, -inf
        %v1310 = vsel %vm1302, %v1055, -inf
        %v1311 = vsel %vm1303, %v1060, -inf
        %v1312 = vsel %vm1304, %v1065, -inf
        %v1313 = vsel %vm1301, %v1159, -inf
        %v1314 = vsel %vm1302, %v1164, -inf
        %v1315 = vsel %vm1303, %v1169, -inf
        %v1316 = vsel %vm1304, %v1174, -inf
        %v1317 = vsel %vm1301, %v1268, -inf
        %v1318 = vsel %vm1302, %v1273, -inf
        %v1319 = vsel %vm1303, %v1278, -inf
        %v1320 = vsel %vm1304, %v1283, -inf
        %vm1321 = vcmask 261120
        %v1322 = vsel %vm1321, %v1305, -inf
        %1323 = vmax.xlane.f32.xlu0 %v1322
        %v1324 = vpop.xlane.xlu0 %1323
        %v1325 = vsel %vm1321, %v1306, -inf
        %1326 = vmax.xlane.f32.xlu0 %v1325
        %v1327 = vpop.xlane.xlu0 %1326
        %v1328 = vsel %vm1321, %v1307, -inf
        %1329 = vmax.xlane.f32.xlu0 %v1328
        %v1330 = vpop.xlane.xlu0 %1329
        %v1331 = vsel %vm1321, %v1308, -inf
        %1332 = vmax.xlane.f32.xlu0 %v1331
        %v1333 = vpop.xlane.xlu0 %1332
        %v1334 = vsel %vm1321, %v1309, -inf
        %1335 = vmax.xlane.f32.xlu0 %v1334
        %v1336 = vpop.xlane.xlu0 %1335
        %v1337 = vsel %vm1321, %v1310, -inf
        %1338 = vmax.xlane.f32.xlu0 %v1337
        %v1339 = vpop.xlane.xlu0 %1338
        %v1340 = vsel %vm1321, %v1311, -inf
        %1341 = vmax.xlane.f32.xlu0 %v1340
        %v1342 = vpop.xlane.xlu0 %1341
        %v1343 = vsel %vm1321, %v1312, -inf
        %1344 = vmax.xlane.f32.xlu0 %v1343
        %v1345 = vpop.xlane.xlu0 %1344
        %v1346 = vsel %vm1321, %v1313, -inf
        %1347 = vmax.xlane.f32.xlu0 %v1346
        %v1348 = vpop.xlane.xlu0 %1347
        %v1349 = vsel %vm1321, %v1314, -inf
        %1350 = vmax.xlane.f32.xlu0 %v1349
        %v1351 = vpop.xlane.xlu0 %1350
        %v1352 = vsel %vm1321, %v1315, -inf
        %1353 = vmax.xlane.f32.xlu0 %v1352
        %v1354 = vpop.xlane.xlu0 %1353
        %v1355 = vsel %vm1321, %v1316, -inf
        %1356 = vmax.xlane.f32.xlu0 %v1355
        %v1357 = vpop.xlane.xlu0 %1356
        %v1358 = vsel %vm1321, %v1317, -inf
        %1359 = vmax.xlane.f32.xlu0 %v1358
        %v1360 = vpop.xlane.xlu0 %1359
        %v1361 = vsel %vm1321, %v1318, -inf
        %1362 = vmax.xlane.f32.xlu0 %v1361
        %v1363 = vpop.xlane.xlu0 %1362
        %v1364 = vsel %vm1321, %v1319, -inf
        %1365 = vmax.xlane.f32.xlu0 %v1364
        %v1366 = vpop.xlane.xlu0 %1365
        %v1367 = vsel %vm1321, %v1320, -inf
        %1368 = vmax.xlane.f32.xlu0 %v1367
        %v1369 = vpop.xlane.xlu0 %1368
        %v1370 = vsub.f32 %v1305, %v1324
        %v1371 = vsub.f32 %v1306, %v1327
        %v1372 = vsub.f32 %v1307, %v1330
        %v1373 = vsub.f32 %v1308, %v1333
        %v1374 = vsub.f32 %v1309, %v1336
        %v1375 = vsub.f32 %v1310, %v1339
        %v1376 = vsub.f32 %v1311, %v1342
        %v1377 = vsub.f32 %v1312, %v1345
        %v1378 = vsub.f32 %v1313, %v1348
        %v1379 = vsub.f32 %v1314, %v1351
        %v1380 = vsub.f32 %v1315, %v1354
        %v1381 = vsub.f32 %v1316, %v1357
        %v1382 = vsub.f32 %v1317, %v1360
        %v1383 = vsub.f32 %v1318, %v1363
        %v1384 = vsub.f32 %v1319, %v1366
        %v1385 = vsub.f32 %v1320, %v1369
        %v1386 = vmul.f32 %v1370, 1.442695
        %v1387 = vpow.pop %v1386
        %v1388 = vmul.f32 %v1371, 1.442695
        %v1389 = vpow.pop %v1388
        %v1390 = vmul.f32 %v1372, 1.442695
        %v1391 = vpow.pop %v1390
        %v1392 = vmul.f32 %v1373, 1.442695
        %v1393 = vpow.pop %v1392
        %v1394 = vmul.f32 %v1374, 1.442695
        %v1395 = vpow.pop %v1394
        %v1396 = vmul.f32 %v1375, 1.442695
        %v1397 = vpow.pop %v1396
        %v1398 = vmul.f32 %v1376, 1.442695
        %v1399 = vpow.pop %v1398
        %v1400 = vmul.f32 %v1377, 1.442695
        %v1401 = vpow.pop %v1400
        %v1402 = vmul.f32 %v1378, 1.442695
        %v1403 = vpow.pop %v1402
        %v1404 = vmul.f32 %v1379, 1.442695
        %v1405 = vpow.pop %v1404
        %v1406 = vmul.f32 %v1380, 1.442695
        %v1407 = vpow.pop %v1406
        %v1408 = vmul.f32 %v1381, 1.442695
        %v1409 = vpow.pop %v1408
        %v1410 = vmul.f32 %v1382, 1.442695
        %v1411 = vpow.pop %v1410
        %v1412 = vmul.f32 %v1383, 1.442695
        %v1413 = vpow.pop %v1412
        %v1414 = vmul.f32 %v1384, 1.442695
        %v1415 = vpow.pop %v1414
        %v1416 = vmul.f32 %v1385, 1.442695
        %v1417 = vpow.pop %v1416
        %v1418 = vsel %vm1321, %v1387, 0.0
        %1419 = vadd.xlane.f32.xlu0 %v1418
        %v1420 = vpop.xlane.xlu0 %1419
        %v1421 = vsel %vm1321, %v1389, 0.0
        %1422 = vadd.xlane.f32.xlu0 %v1421
        %v1423 = vpop.xlane.xlu0 %1422
        %v1424 = vsel %vm1321, %v1391, 0.0
        %1425 = vadd.xlane.f32.xlu0 %v1424
        %v1426 = vpop.xlane.xlu0 %1425
        %v1427 = vsel %vm1321, %v1393, 0.0
        %1428 = vadd.xlane.f32.xlu0 %v1427
        %v1429 = vpop.xlane.xlu0 %1428
        %v1430 = vsel %vm1321, %v1395, 0.0
        %1431 = vadd.xlane.f32.xlu0 %v1430
        %v1432 = vpop.xlane.xlu0 %1431
        %v1433 = vsel %vm1321, %v1397, 0.0
        %1434 = vadd.xlane.f32.xlu0 %v1433
        %v1435 = vpop.xlane.xlu0 %1434
        %v1436 = vsel %vm1321, %v1399, 0.0
        %1437 = vadd.xlane.f32.xlu0 %v1436
        %v1438 = vpop.xlane.xlu0 %1437
        %v1439 = vsel %vm1321, %v1401, 0.0
        %1440 = vadd.xlane.f32.xlu0 %v1439
        %v1441 = vpop.xlane.xlu0 %1440
        %v1442 = vsel %vm1321, %v1403, 0.0
        %1443 = vadd.xlane.f32.xlu0 %v1442
        %v1444 = vpop.xlane.xlu0 %1443
        %v1445 = vsel %vm1321, %v1405, 0.0
        %1446 = vadd.xlane.f32.xlu0 %v1445
        %v1447 = vpop.xlane.xlu0 %1446
        %v1448 = vsel %vm1321, %v1407, 0.0
        %1449 = vadd.xlane.f32.xlu0 %v1448
        %v1450 = vpop.xlane.xlu0 %1449
        %v1451 = vsel %vm1321, %v1409, 0.0
        %1452 = vadd.xlane.f32.xlu0 %v1451
        %v1453 = vpop.xlane.xlu0 %1452
        %v1454 = vsel %vm1321, %v1411, 0.0
        %1455 = vadd.xlane.f32.xlu0 %v1454
        %v1456 = vpop.xlane.xlu0 %1455
        %v1457 = vsel %vm1321, %v1413, 0.0
        %1458 = vadd.xlane.f32.xlu0 %v1457
        %v1459 = vpop.xlane.xlu0 %1458
        %v1460 = vsel %vm1321, %v1415, 0.0
        %1461 = vadd.xlane.f32.xlu0 %v1460
        %v1462 = vpop.xlane.xlu0 %1461
        %v1463 = vsel %vm1321, %v1417, 0.0
        %1464 = vadd.xlane.f32.xlu0 %v1463
        %v1465 = vpop.xlane.xlu0 %1464
        %v1467 = vsel %vm1321, %v1387, 0
        %v1470 = vsel %vm1321, %v1389, 0
        %v1473 = vsel %vm1321, %v1391, 0
        %v1476 = vsel %vm1321, %v1393, 0
        %1478 = vmatprep.subr.mxu0 0.0
        %1479 = vmatpush1.msra.mxu0 0.0
        %1480 = vmatprep.subr.mxu0 0.0
        %1481 = vmatpush1.msra.mxu0 0.0
        %1482 = vmatprep.subr.mxu0 0.0
        %1483 = vmatpush1.msra.mxu0 0.0
        %1484 = vmatprep.subr.mxu0 0.0
        %1485 = vmatpush1.msra.mxu0 0.0
        %1486 = vmatprep.subr.mxu0 0.0
        %1487 = vmatpush1.msra.mxu0 0.0
        %1488 = vmatprep.subr.mxu0 0.0
        %1489 = vmatpush1.msra.mxu0 0.0
        %1490 = vmatprep.subr.mxu0 0.0
        %1491 = vmatpush1.msra.mxu0 0.0
        %1492 = vmatprep.subr.mxu0 0.0
        %1493 = vmatpush1.msra.mxu0 0.0
        %1494 = vmatprep.subr.mxu0 0.0
        %1495 = vmatpush1.msra.mxu0 0.0
        %1496 = vmatprep.subr.mxu0 0.0
        %1497 = vmatpush1.msra.mxu0 0.0
        %1498 = vmatprep.subr.mxu0 0.0
        %1499 = vmatpush1.msra.mxu0 0.0
        %1500 = vmatprep.subr.mxu0 0.0
        %1501 = vmatpush1.msra.mxu0 0.0
        %1502 = vmatprep.subr.mxu0 0.0
        %1503 = vmatpush1.msra.mxu0 %v786
        %1504 = vmatprep.subr.mxu0 0.0
        %1505 = vmatpush1.msra.mxu0 %v781
        %1506 = vmatprep.subr.mxu0 0.0
        %1507 = vmatpush1.msra.mxu0 %v776
        %1508 = vmatprep.subr.mxu0 0.0
        %1509 = vmatpush1.msra.mxu0 %v771
        %1510 = vmatprep.subr.mxu0 0.0
        %1511 = vmatpush2.msra.mxu0 0.0
        %1512 = vmatprep.subr.mxu0 0.0
        %1513 = vmatpush2.msra.mxu0 0.0
        %1514 = vmatprep.subr.mxu0 0.0
        %1515 = vmatpush2.msra.mxu0 0.0
        %1516 = vmatprep.subr.mxu0 0.0
        %1517 = vmatpush2.msra.mxu0 0.0
        %1518 = vmatprep.subr.mxu0 0.0
        %1519 = vmatpush2.msra.mxu0 0.0
        %1520 = vmatprep.subr.mxu0 0.0
        %1521 = vmatpush2.msra.mxu0 0.0
        %1522 = vmatprep.subr.mxu0 0.0
        %1523 = vmatpush2.msra.mxu0 0.0
        %1524 = vmatprep.subr.mxu0 0.0
        %1525 = vmatpush2.msra.mxu0 0.0
        %1526 = vmatprep.subr.mxu0 0.0
        %1527 = vmatpush2.msra.mxu0 0.0
        %1528 = vmatprep.subr.mxu0 0.0
        %1529 = vmatpush2.msra.mxu0 0.0
        %1530 = vmatprep.subr.mxu0 0.0
        %1531 = vmatpush2.msra.mxu0 0.0
        %1532 = vmatprep.subr.mxu0 0.0
        %1533 = vmatpush2.msra.mxu0 0.0
        %1534 = vmatprep.subr.mxu0 0.0
        %1535 = vmatpush2.msra.mxu0 0.0
        %1536 = vmatprep.subr.mxu0 0.0
        %1537 = vmatpush2.msra.mxu0 0.0
        %1538 = vmatprep.subr.mxu0 0.0
        %1539 = vmatpush2.msra.mxu0 0.0
        %1540 = vmatprep.subr.mxu0 0.0
        %1541 = vmatpush2.msra.mxu0 0.0
        %1542 = vmatprep.mubr.f32.mxu0 0.0
        %1543 = vmatmul.mubr.f32.gmra.mxu0 %v1467
        %v1544 = vpop.f32.mrf.mxu0
        %v1545 = vadd.f32 0.0, %v1544
        %v1546 = vpop.f32.mrf.mxu0
        %1547 = vmatprep.mubr.f32.mxu0 0.0
        %1548 = vmatmul.mubr.f32.gmra.mxu0 %v1470
        %v1549 = vpop.f32.mrf.mxu0
        %v1550 = vadd.f32 0.0, %v1549
        %v1551 = vpop.f32.mrf.mxu0
        %1552 = vmatprep.mubr.f32.mxu0 0.0
        %1553 = vmatmul.mubr.f32.gmra.mxu0 %v1473
        %v1554 = vpop.f32.mrf.mxu0
        %v1555 = vadd.f32 0.0, %v1554
        %v1556 = vpop.f32.mrf.mxu0
        %1557 = vmatprep.mubr.f32.mxu0 0.0
        %1558 = vmatmul.mubr.f32.gmra.mxu0 %v1476
        %v1559 = vpop.f32.mrf.mxu0
        %v1560 = vadd.f32 0.0, %v1559
        %v1561 = vpop.f32.mrf.mxu0
        %1562 = vdwg.mxu0
        %v1564 = vsel %vm1321, %v1395, 0
        %v1567 = vsel %vm1321, %v1397, 0
        %v1570 = vsel %vm1321, %v1399, 0
        %v1573 = vsel %vm1321, %v1401, 0
        %1575 = vmatprep.subr.mxu0 0.0
        %1576 = vmatpush1.msra.mxu0 0.0
        %1577 = vmatprep.subr.mxu0 0.0
        %1578 = vmatpush1.msra.mxu0 0.0
        %1579 = vmatprep.subr.mxu0 0.0
        %1580 = vmatpush1.msra.mxu0 0.0
        %1581 = vmatprep.subr.mxu0 0.0
        %1582 = vmatpush1.msra.mxu0 0.0
        %1583 = vmatprep.subr.mxu0 0.0
        %1584 = vmatpush1.msra.mxu0 0.0
        %1585 = vmatprep.subr.mxu0 0.0
        %1586 = vmatpush1.msra.mxu0 0.0
        %1587 = vmatprep.subr.mxu0 0.0
        %1588 = vmatpush1.msra.mxu0 0.0
        %1589 = vmatprep.subr.mxu0 0.0
        %1590 = vmatpush1.msra.mxu0 0.0
        %1591 = vmatprep.subr.mxu0 0.0
        %1592 = vmatpush1.msra.mxu0 0.0
        %1593 = vmatprep.subr.mxu0 0.0
        %1594 = vmatpush1.msra.mxu0 0.0
        %1595 = vmatprep.subr.mxu0 0.0
        %1596 = vmatpush1.msra.mxu0 0.0
        %1597 = vmatprep.subr.mxu0 0.0
        %1598 = vmatpush1.msra.mxu0 0.0
        %1599 = vmatprep.subr.mxu0 0.0
        %1600 = vmatpush1.msra.mxu0 %v806
        %1601 = vmatprep.subr.mxu0 0.0
        %1602 = vmatpush1.msra.mxu0 %v801
        %1603 = vmatprep.subr.mxu0 0.0
        %1604 = vmatpush1.msra.mxu0 %v796
        %1605 = vmatprep.subr.mxu0 0.0
        %1606 = vmatpush1.msra.mxu0 %v791
        %1607 = vmatprep.subr.mxu0 0.0
        %1608 = vmatpush2.msra.mxu0 0.0
        %1609 = vmatprep.subr.mxu0 0.0
        %1610 = vmatpush2.msra.mxu0 0.0
        %1611 = vmatprep.subr.mxu0 0.0
        %1612 = vmatpush2.msra.mxu0 0.0
        %1613 = vmatprep.subr.mxu0 0.0
        %1614 = vmatpush2.msra.mxu0 0.0
        %1615 = vmatprep.subr.mxu0 0.0
        %1616 = vmatpush2.msra.mxu0 0.0
        %1617 = vmatprep.subr.mxu0 0.0
        %1618 = vmatpush2.msra.mxu0 0.0
        %1619 = vmatprep.subr.mxu0 0.0
        %1620 = vmatpush2.msra.mxu0 0.0
        %1621 = vmatprep.subr.mxu0 0.0
        %1622 = vmatpush2.msra.mxu0 0.0
        %1623 = vmatprep.subr.mxu0 0.0
        %1624 = vmatpush2.msra.mxu0 0.0
        %1625 = vmatprep.subr.mxu0 0.0
        %1626 = vmatpush2.msra.mxu0 0.0
        %1627 = vmatprep.subr.mxu0 0.0
        %1628 = vmatpush2.msra.mxu0 0.0
        %1629 = vmatprep.subr.mxu0 0.0
        %1630 = vmatpush2.msra.mxu0 0.0
        %1631 = vmatprep.subr.mxu0 0.0
        %1632 = vmatpush2.msra.mxu0 0.0
        %1633 = vmatprep.subr.mxu0 0.0
        %1634 = vmatpush2.msra.mxu0 0.0
        %1635 = vmatprep.subr.mxu0 0.0
        %1636 = vmatpush2.msra.mxu0 0.0
        %1637 = vmatprep.subr.mxu0 0.0
        %1638 = vmatpush2.msra.mxu0 0.0
        %1639 = vmatprep.mubr.f32.mxu0 0.0
        %1640 = vmatmul.mubr.f32.gmra.mxu0 %v1564
        %v1641 = vpop.f32.mrf.mxu0
        %v1642 = vadd.f32 0.0, %v1641
        %v1643 = vpop.f32.mrf.mxu0
        %1644 = vmatprep.mubr.f32.mxu0 0.0
        %1645 = vmatmul.mubr.f32.gmra.mxu0 %v1567
        %v1646 = vpop.f32.mrf.mxu0
        %v1647 = vadd.f32 0.0, %v1646
        %v1648 = vpop.f32.mrf.mxu0
        %1649 = vmatprep.mubr.f32.mxu0 0.0
        %1650 = vmatmul.mubr.f32.gmra.mxu0 %v1570
        %v1651 = vpop.f32.mrf.mxu0
        %v1652 = vadd.f32 0.0, %v1651
        %v1653 = vpop.f32.mrf.mxu0
        %1654 = vmatprep.mubr.f32.mxu0 0.0
        %1655 = vmatmul.mubr.f32.gmra.mxu0 %v1573
        %v1656 = vpop.f32.mrf.mxu0
        %v1657 = vadd.f32 0.0, %v1656
        %v1658 = vpop.f32.mrf.mxu0
        %1659 = vdwg.mxu0
        %v1661 = vsel %vm1321, %v1403, 0
        %v1664 = vsel %vm1321, %v1405, 0
        %v1667 = vsel %vm1321, %v1407, 0
        %v1670 = vsel %vm1321, %v1409, 0
        %1672 = vmatprep.subr.mxu0 0.0
        %1673 = vmatpush1.msra.mxu0 0.0
        %1674 = vmatprep.subr.mxu0 0.0
        %1675 = vmatpush1.msra.mxu0 0.0
        %1676 = vmatprep.subr.mxu0 0.0
        %1677 = vmatpush1.msra.mxu0 0.0
        %1678 = vmatprep.subr.mxu0 0.0
        %1679 = vmatpush1.msra.mxu0 0.0
        %1680 = vmatprep.subr.mxu0 0.0
        %1681 = vmatpush1.msra.mxu0 0.0
        %1682 = vmatprep.subr.mxu0 0.0
        %1683 = vmatpush1.msra.mxu0 0.0
        %1684 = vmatprep.subr.mxu0 0.0
        %1685 = vmatpush1.msra.mxu0 0.0
        %1686 = vmatprep.subr.mxu0 0.0
        %1687 = vmatpush1.msra.mxu0 0.0
        %1688 = vmatprep.subr.mxu0 0.0
        %1689 = vmatpush1.msra.mxu0 0.0
        %1690 = vmatprep.subr.mxu0 0.0
        %1691 = vmatpush1.msra.mxu0 0.0
        %1692 = vmatprep.subr.mxu0 0.0
        %1693 = vmatpush1.msra.mxu0 0.0
        %1694 = vmatprep.subr.mxu0 0.0
        %1695 = vmatpush1.msra.mxu0 0.0
        %1696 = vmatprep.subr.mxu0 0.0
        %1697 = vmatpush1.msra.mxu0 %v826
        %1698 = vmatprep.subr.mxu0 0.0
        %1699 = vmatpush1.msra.mxu0 %v821
        %1700 = vmatprep.subr.mxu0 0.0
        %1701 = vmatpush1.msra.mxu0 %v816
        %1702 = vmatprep.subr.mxu0 0.0
        %1703 = vmatpush1.msra.mxu0 %v811
        %1704 = vmatprep.subr.mxu0 0.0
        %1705 = vmatpush2.msra.mxu0 0.0
        %1706 = vmatprep.subr.mxu0 0.0
        %1707 = vmatpush2.msra.mxu0 0.0
        %1708 = vmatprep.subr.mxu0 0.0
        %1709 = vmatpush2.msra.mxu0 0.0
        %1710 = vmatprep.subr.mxu0 0.0
        %1711 = vmatpush2.msra.mxu0 0.0
        %1712 = vmatprep.subr.mxu0 0.0
        %1713 = vmatpush2.msra.mxu0 0.0
        %1714 = vmatprep.subr.mxu0 0.0
        %1715 = vmatpush2.msra.mxu0 0.0
        %1716 = vmatprep.subr.mxu0 0.0
        %1717 = vmatpush2.msra.mxu0 0.0
        %1718 = vmatprep.subr.mxu0 0.0
        %1719 = vmatpush2.msra.mxu0 0.0
        %1720 = vmatprep.subr.mxu0 0.0
        %1721 = vmatpush2.msra.mxu0 0.0
        %1722 = vmatprep.subr.mxu0 0.0
        %1723 = vmatpush2.msra.mxu0 0.0
        %1724 = vmatprep.subr.mxu0 0.0
        %1725 = vmatpush2.msra.mxu0 0.0
        %1726 = vmatprep.subr.mxu0 0.0
        %1727 = vmatpush2.msra.mxu0 0.0
        %1728 = vmatprep.subr.mxu0 0.0
        %1729 = vmatpush2.msra.mxu0 0.0
        %1730 = vmatprep.subr.mxu0 0.0
        %1731 = vmatpush2.msra.mxu0 0.0
        %1732 = vmatprep.subr.mxu0 0.0
        %1733 = vmatpush2.msra.mxu0 0.0
        %1734 = vmatprep.subr.mxu0 0.0
        %1735 = vmatpush2.msra.mxu0 0.0
        %1736 = vmatprep.mubr.f32.mxu0 0.0
        %1737 = vmatmul.mubr.f32.gmra.mxu0 %v1661
        %v1738 = vpop.f32.mrf.mxu0
        %v1739 = vadd.f32 0.0, %v1738
        %v1740 = vpop.f32.mrf.mxu0
        %1741 = vmatprep.mubr.f32.mxu0 0.0
        %1742 = vmatmul.mubr.f32.gmra.mxu0 %v1664
        %v1743 = vpop.f32.mrf.mxu0
        %v1744 = vadd.f32 0.0, %v1743
        %v1745 = vpop.f32.mrf.mxu0
        %1746 = vmatprep.mubr.f32.mxu0 0.0
        %1747 = vmatmul.mubr.f32.gmra.mxu0 %v1667
        %v1748 = vpop.f32.mrf.mxu0
        %v1749 = vadd.f32 0.0, %v1748
        %v1750 = vpop.f32.mrf.mxu0
        %1751 = vmatprep.mubr.f32.mxu0 0.0
        %1752 = vmatmul.mubr.f32.gmra.mxu0 %v1670
        %v1753 = vpop.f32.mrf.mxu0
        %v1754 = vadd.f32 0.0, %v1753
        %v1755 = vpop.f32.mrf.mxu0
        %1756 = vdwg.mxu0
        %v1758 = vsel %vm1321, %v1411, 0
        %v1761 = vsel %vm1321, %v1413, 0
        %v1764 = vsel %vm1321, %v1415, 0
        %v1767 = vsel %vm1321, %v1417, 0
        %1769 = vmatprep.subr.mxu0 0.0
        %1770 = vmatpush1.msra.mxu0 0.0
        %1771 = vmatprep.subr.mxu0 0.0
        %1772 = vmatpush1.msra.mxu0 0.0
        %1773 = vmatprep.subr.mxu0 0.0
        %1774 = vmatpush1.msra.mxu0 0.0
        %1775 = vmatprep.subr.mxu0 0.0
        %1776 = vmatpush1.msra.mxu0 0.0
        %1777 = vmatprep.subr.mxu0 0.0
        %1778 = vmatpush1.msra.mxu0 0.0
        %1779 = vmatprep.subr.mxu0 0.0
        %1780 = vmatpush1.msra.mxu0 0.0
        %1781 = vmatprep.subr.mxu0 0.0
        %1782 = vmatpush1.msra.mxu0 0.0
        %1783 = vmatprep.subr.mxu0 0.0
        %1784 = vmatpush1.msra.mxu0 0.0
        %1785 = vmatprep.subr.mxu0 0.0
        %1786 = vmatpush1.msra.mxu0 0.0
        %1787 = vmatprep.subr.mxu0 0.0
        %1788 = vmatpush1.msra.mxu0 0.0
        %1789 = vmatprep.subr.mxu0 0.0
        %1790 = vmatpush1.msra.mxu0 0.0
        %1791 = vmatprep.subr.mxu0 0.0
        %1792 = vmatpush1.msra.mxu0 0.0
        %1793 = vmatprep.subr.mxu0 0.0
        %1794 = vmatpush1.msra.mxu0 %v846
        %1795 = vmatprep.subr.mxu0 0.0
        %1796 = vmatpush1.msra.mxu0 %v841
        %1797 = vmatprep.subr.mxu0 0.0
        %1798 = vmatpush1.msra.mxu0 %v836
        %1799 = vmatprep.subr.mxu0 0.0
        %1800 = vmatpush1.msra.mxu0 %v831
        %1801 = vmatprep.subr.mxu0 0.0
        %1802 = vmatpush2.msra.mxu0 0.0
        %1803 = vmatprep.subr.mxu0 0.0
        %1804 = vmatpush2.msra.mxu0 0.0
        %1805 = vmatprep.subr.mxu0 0.0
        %1806 = vmatpush2.msra.mxu0 0.0
        %1807 = vmatprep.subr.mxu0 0.0
        %1808 = vmatpush2.msra.mxu0 0.0
        %1809 = vmatprep.subr.mxu0 0.0
        %1810 = vmatpush2.msra.mxu0 0.0
        %1811 = vmatprep.subr.mxu0 0.0
        %1812 = vmatpush2.msra.mxu0 0.0
        %1813 = vmatprep.subr.mxu0 0.0
        %1814 = vmatpush2.msra.mxu0 0.0
        %1815 = vmatprep.subr.mxu0 0.0
        %1816 = vmatpush2.msra.mxu0 0.0
        %1817 = vmatprep.subr.mxu0 0.0
        %1818 = vmatpush2.msra.mxu0 0.0
        %1819 = vmatprep.subr.mxu0 0.0
        %1820 = vmatpush2.msra.mxu0 0.0
        %1821 = vmatprep.subr.mxu0 0.0
        %1822 = vmatpush2.msra.mxu0 0.0
        %1823 = vmatprep.subr.mxu0 0.0
        %1824 = vmatpush2.msra.mxu0 0.0
        %1825 = vmatprep.subr.mxu0 0.0
        %1826 = vmatpush2.msra.mxu0 0.0
        %1827 = vmatprep.subr.mxu0 0.0
        %1828 = vmatpush2.msra.mxu0 0.0
        %1829 = vmatprep.subr.mxu0 0.0
        %1830 = vmatpush2.msra.mxu0 0.0
        %1831 = vmatprep.subr.mxu0 0.0
        %1832 = vmatpush2.msra.mxu0 0.0
        %1833 = vmatprep.mubr.f32.mxu0 0.0
        %1834 = vmatmul.mubr.f32.gmra.mxu0 %v1758
        %v1835 = vpop.f32.mrf.mxu0
        %v1836 = vadd.f32 0.0, %v1835
        %v1837 = vpop.f32.mrf.mxu0
        %1838 = vmatprep.mubr.f32.mxu0 0.0
        %1839 = vmatmul.mubr.f32.gmra.mxu0 %v1761
        %v1840 = vpop.f32.mrf.mxu0
        %v1841 = vadd.f32 0.0, %v1840
        %v1842 = vpop.f32.mrf.mxu0
        %1843 = vmatprep.mubr.f32.mxu0 0.0
        %1844 = vmatmul.mubr.f32.gmra.mxu0 %v1764
        %v1845 = vpop.f32.mrf.mxu0
        %v1846 = vadd.f32 0.0, %v1845
        %v1847 = vpop.f32.mrf.mxu0
        %1848 = vmatprep.mubr.f32.mxu0 0.0
        %1849 = vmatmul.mubr.f32.gmra.mxu0 %v1767
        %v1850 = vpop.f32.mrf.mxu0
        %v1851 = vadd.f32 0.0, %v1850
        %v1852 = vpop.f32.mrf.mxu0
        %1853 = vdwg.mxu0
        %v1854 = vrcp.pop %v1420
        %v1855 = vrcp.pop %v1423
        %v1856 = vrcp.pop %v1426
        %v1857 = vrcp.pop %v1429
        %v1858 = vrcp.pop %v1432
        %v1859 = vrcp.pop %v1435
        %v1860 = vrcp.pop %v1438
        %v1861 = vrcp.pop %v1441
        %v1862 = vrcp.pop %v1444
        %v1863 = vrcp.pop %v1447
        %v1864 = vrcp.pop %v1450
        %v1865 = vrcp.pop %v1453
        %v1866 = vrcp.pop %v1456
        %v1867 = vrcp.pop %v1459
        %v1868 = vrcp.pop %v1462
        %v1869 = vrcp.pop %v1465
        %v1870 = vmul.f32 %v1545, %v1854
        %v1871 = vmul.f32 %v1550, %v1855
        %v1872 = vmul.f32 %v1555, %v1856
        %v1873 = vmul.f32 %v1560, %v1857
        %v1874 = vmul.f32 %v1642, %v1858
        %v1875 = vmul.f32 %v1647, %v1859
        %v1876 = vmul.f32 %v1652, %v1860
        %v1877 = vmul.f32 %v1657, %v1861
        %v1878 = vmul.f32 %v1739, %v1862
        %v1879 = vmul.f32 %v1744, %v1863
        %v1880 = vmul.f32 %v1749, %v1864
        %v1881 = vmul.f32 %v1754, %v1865
        %v1882 = vmul.f32 %v1836, %v1866
        %v1883 = vmul.f32 %v1841, %v1867
        %v1884 = vmul.f32 %v1846, %v1868
        %v1885 = vmul.f32 %v1851, %v1869
        %1886 = vst.msk [vmem:[%s302] sm:$0xff] %vm849, %v1870
        %1887 = vst.msk [vmem:[%s302 + $0x8] sm:$0xff] %vm849, %v1871
        %1888 = vst.msk [vmem:[%s302 + $0x10] sm:$0xff] %vm849, %v1872
        %1889 = vst.msk [vmem:[%s302 + $0x18] sm:$0xff] %vm849, %v1873
        %1890 = vst.msk [vmem:[%s302 + $0x20] sm:$0xff] %vm849, %v1874
        %1891 = vst.msk [vmem:[%s302 + $0x28] sm:$0xff] %vm849, %v1875
        %1892 = vst.msk [vmem:[%s302 + $0x30] sm:$0xff] %vm849, %v1876
        %1893 = vst.msk [vmem:[%s302 + $0x38] sm:$0xff] %vm849, %v1877
        %1894 = vst.msk [vmem:[%s302 + $0x40] sm:$0xff] %vm849, %v1878
        %1895 = vst.msk [vmem:[%s302 + $0x48] sm:$0xff] %vm849, %v1879
        %1896 = vst.msk [vmem:[%s302 + $0x50] sm:$0xff] %vm849, %v1880
        %1897 = vst.msk [vmem:[%s302 + $0x58] sm:$0xff] %vm849, %v1881
        %1898 = vst.msk [vmem:[%s302 + $0x60] sm:$0xff] %vm849, %v1882
        %1899 = vst.msk [vmem:[%s302 + $0x68] sm:$0xff] %vm849, %v1883
        %1900 = vst.msk [vmem:[%s302 + $0x70] sm:$0xff] %vm849, %v1884
        %1901 = vst.msk [vmem:[%s302 + $0x78] sm:$0xff] %vm849, %v1885
        %s1902 = smul.u32 4, %s21
        %p1903 = scmp.lt.s32.totalorder %s1902, 7
        %s1904 = scalar_select %p1903, %s1902, 7
        %s1905 = smul.addr %s1904, 4
        %s1906 = smul.addr %s1905, 8
        %s1907 = scalar_lea.vmem %s7, %s1906
        // Predicated region
        $region53: #{tpu_custom_call.1} parent=47 // pred_check
          %p1908 = pneg %p191
        $region54: #{tpu_custom_call.1} parent=47 // pred_check_branch
          %1910 = sbr.rel (%p1908) target = $region56
        $region55: #{tpu_custom_call.1} parent=47 // pred_region
          %s1911 = smul.u32 4, %s21
        $region56: #{tpu_custom_call.1} parent=47 // pred_fallthru
          _
      $region48: #{tpu_custom_call.1} parent=5 // pred_fallthru
        _
      %p1912 = scmp.le.s32.totalorder 2, %s16
      // Predicated region
      $region57: #{tpu_custom_call.1} parent=5 // pred_check
        %p1913 = pneg %p1912
      $region58: #{tpu_custom_call.1} parent=5 // pred_check_branch
        %1915 = sbr.rel (%p1913) target = $region60
      $region59: #{tpu_custom_call.1} parent=5 // pred_region
        %s1916 = ssub.s32 %s16, 2
        // Predicated region
        $region61: #{tpu_custom_call.1} parent=59 // pred_check
          %p1917 = pneg %p197
        $region62: #{tpu_custom_call.1} parent=59 // pred_check_branch
          %1919 = sbr.rel (%p1917) target = $region64
        $region63: #{tpu_custom_call.1} parent=59 // pred_region
          %s1920 = smul.u32 4, %s22
          %p1921 = scmp.lt.s32.totalorder %s1920, 7
          %s1922 = scalar_select %p1921, %s1920, 7
          %s1923 = smul.addr %s1922, 4
          %s1924 = smul.addr %s1923, 8
          %s1925 = scalar_lea.vmem %s7, %s1924
        $region64: #{tpu_custom_call.1} parent=59 // pred_fallthru
          _
      $region60: #{tpu_custom_call.1} parent=5 // pred_fallthru
        _
    $region6: #{tpu_custom_call.1} parent=1 // loop_footer
      %s20 = sadd.s32 1, %s16
    $region7: #{tpu_custom_call.1} parent=1 // loop_footer_branch
      %15 = sbr.rel target = $region3
    $region8: #{tpu_custom_call.1} parent=1 // loop_exit
      _
    %1926 = vsyncpa [#allocation3], 1
    %s1927 = scalar_lea.sflag [#allocation3], 1
    %1928 = vsyncpa %s1927, 1

</llo_original>
